<compile_context>
chip_gen: v5e
topology: v5e:2x2
jax: 0.10.0
libtpu: 0.0.40
codegen_flags: <defaults>
</compile_context>

<pallas_src>
import functools

import numpy as np
import jax
import jax.numpy as jnp
from jax.experimental import pallas as pl
from jax.experimental.pallas import tpu as pltpu


def _layer_norm(y, g, b, eps=1e-5):
    mu = jnp.mean(y, axis=-1, keepdims=True)
    var = jnp.mean((y - mu) ** 2, axis=-1, keepdims=True)
    return (y - mu) * jax.lax.rsqrt(var + eps) * g + b


def encoder_stack_kernel(x_ref, pe_ref, wqkv_ref, bqkv_ref, wo_ref, w1_ref,
                         b1_ref, w2_ref, vecs_ref, out_ref, *,
                         batch, seq, hidden, num_heads, d_head, layer_num):
    n_tok = batch * seq

    # Weights are shared across all layers: read each ref exactly once and keep
    # the values live across the (static) layer loop -- no re-reads, no .T.
    wqkv = wqkv_ref[...]          # (H, 3H)  pre-transposed, q|k|v fused
    bqkv = bqkv_ref[...]          # (1, 3H)
    wo = wo_ref[...]              # (H, H)
    w1 = w1_ref[...]              # (H, F)
    b1 = b1_ref[...]              # (1, F)
    w2 = w2_ref[...]              # (F, H)
    vecs = vecs_ref[...]          # (6, H)   packed small vectors
    bo = vecs[0:1, :]
    ln1_g = vecs[1:2, :]
    ln1_b = vecs[2:3, :]
    ln2_g = vecs[3:4, :]
    ln2_b = vecs[4:5, :]
    b2 = vecs[5:6, :]

    scale = 1.0 / (d_head ** 0.5)

    # Positional encoding fused into the kernel: (B,S,H) + (1,S,H) broadcast,
    # then flatten tokens so every matmul is one GEMM over all B*S tokens.
    x = (x_ref[...] + pe_ref[...][None]).reshape(n_tok, hidden)

    for _ in range(layer_num):    # shared-weight layers fused into one kernel
        # Fused q/k/v projection: single (B*S, H) x (H, 3H) matmul.
        qkv = jnp.dot(x, wqkv, preferred_element_type=jnp.float32) + bqkv
        qkv3 = qkv.reshape(batch, seq, 3 * hidden)

        heads = []
        for h in range(num_heads):                      # static unroll (nh=4)
            lo = h * d_head
            qh = qkv3[:, :, lo:lo + d_head]                           # (B,S,d)
            kh = qkv3[:, :, hidden + lo:hidden + lo + d_head]
            vh = qkv3[:, :, 2 * hidden + lo:2 * hidden + lo + d_head]
            score = jnp.einsum('bqd,bkd->bqk', qh, kh,
                               preferred_element_type=jnp.float32) * scale
            t = jnp.einsum('bqk,bkd->bqd', score, vh,
                           preferred_element_type=jnp.float32)
            # NB: the reference applies softmax to (score @ V) over its LAST
            # axis (the per-head feature axis) -- reproduced exactly here.
            m = jnp.max(t, axis=-1, keepdims=True)
            e = jnp.exp(t - m)
            inv = pl.reciprocal(jnp.sum(e, axis=-1, keepdims=True), approx=True)
            heads.append(e * inv)
        att = jnp.concatenate(heads, axis=-1).reshape(n_tok, hidden)

        out1 = jnp.dot(att, wo, preferred_element_type=jnp.float32) + bo

        # Add_Norm: x + LayerNorm(x); dropout identity in eval mode.
        res1 = out1 + _layer_norm(out1, ln1_g, ln1_b)
        fusion = out1 + res1

        # PositionWiseFFN
        hid = jnp.maximum(
            jnp.dot(fusion, w1, preferred_element_type=jnp.float32) + b1, 0.0)
        ffn = jnp.dot(hid, w2, preferred_element_type=jnp.float32) + b2

        out2 = ffn + _layer_norm(ffn, ln1_g, ln1_b)      # add_norm (ln1 params)
        res2 = (fusion + _layer_norm(fusion, ln2_g, ln2_b)) + out2  # add_norm2
        x = out2 + res2

    out_ref[...] = x.reshape(batch, seq, hidden)


def encoder_stack(x3, pe_s, packed_params, *, num_heads, layer_num):
    B, S, H = x3.shape
    kernel = functools.partial(
        encoder_stack_kernel, batch=B, seq=S, hidden=H,
        num_heads=num_heads, d_head=H // num_heads, layer_num=layer_num)
    # No grid: each operand is mapped whole into VMEM (everything here is tiny).
    vmem = pl.BlockSpec(memory_space=pltpu.MemorySpace.VMEM)
    return pl.pallas_call(
        kernel,
        out_shape=jax.ShapeDtypeStruct((B, S, H), jnp.float32),
        in_specs=[vmem] * (2 + len(packed_params)),
        out_specs=vmem,
    )(x3, pe_s, *packed_params)


def init_params(key, H, ffn_hidden, vocab):
    """Parameters in the PyTorch nn.Linear convention: W is (out, in)."""
    keys = jax.random.split(key, 8)

    def lin(k, out_f, in_f):
        k1, k2 = jax.random.split(k)
        bound = 1.0 / np.sqrt(in_f)
        w = jax.random.uniform(k1, (out_f, in_f), jnp.float32, -bound, bound)
        b = jax.random.uniform(k2, (1, out_f), jnp.float32, -bound, bound)
        return w, b

    wq, bq = lin(keys[0], H, H)
    wk, bk = lin(keys[1], H, H)
    wv, bv = lin(keys[2], H, H)
    wo, bo = lin(keys[3], H, H)
    w1, b1 = lin(keys[4], ffn_hidden, H)
    w2, b2 = lin(keys[5], H, ffn_hidden)
    ln1_g = jnp.ones((1, H), jnp.float32)
    ln1_b = jnp.zeros((1, H), jnp.float32)
    ln2_g = jnp.ones((1, H), jnp.float32)
    ln2_b = jnp.zeros((1, H), jnp.float32)
    emb = jax.random.normal(keys[6], (vocab, H), jnp.float32)
    block_params = (wq, bq, wk, bk, wv, bv, wo, bo,
                    ln1_g, ln1_b, ln2_g, ln2_b, w1, b1, w2, b2)
    return emb, block_params


def pack_params(emb, block_params):
    """One-time host-side prep: fold sqrt(H) into the embedding table,
    pre-transpose Linears to (in, out), fuse q/k/v into one GEMM operand and
    pack the small vectors into a single (6, H) operand."""
    (wq, bq, wk, bk, wv, bv, wo, bo,
     ln1_g, ln1_b, ln2_g, ln2_b, w1, b1, w2, b2) = block_params
    H = emb.shape[1]
    emb_scaled = emb * np.float32(np.sqrt(H))
    wqkv = jnp.concatenate([wq.T, wk.T, wv.T], axis=1)                   # (H, 3H)
    bqkv = jnp.concatenate([bq, bk, bv], axis=1)                         # (1, 3H)
    vecs = jnp.concatenate([bo, ln1_g, ln1_b, ln2_g, ln2_b, b2], axis=0)  # (6, H)
    packed = (wqkv, bqkv, wo.T, w1.T, b1, w2.T, vecs)
    return emb_scaled, packed


def make_positional_encoding(max_len, H):
    pos = np.arange(max_len, dtype=np.float32).reshape(-1, 1)
    i = np.arange(0, H, 2, dtype=np.float32)
    angle = pos / (10000.0 ** (i / H))
    pe = np.zeros((1, max_len, H), np.float32)
    pe[:, :, 0::2] = np.sin(angle)
    pe[:, :, 1::2] = np.cos(angle)
    return jnp.asarray(pe)


@functools.partial(jax.jit, static_argnums=(4, 5))
def transformer_encoder(token_ids, emb_scaled, packed_params, pe,
                        num_heads, layer_num):
    S = token_ids.shape[1]
    x = emb_scaled[token_ids]           # gather: the only XLA op outside Pallas
    pe_s = pe[0, :S, :]                 # static slice (S, H)
    return encoder_stack(x, pe_s, packed_params,
                         num_heads=num_heads, layer_num=layer_num)


# ----------------------------------------------------------------------------
# Pure-JAX reference (mirrors the PyTorch module, eval mode) for validation.
# ----------------------------------------------------------------------------
@functools.partial(jax.jit, static_argnums=(4, 5))
def reference_forward(token_ids, emb, block_params, pe, num_heads, layer_num):
    (wq, bq, wk, bk, wv, bv, wo, bo,
     ln1_g, ln1_b, ln2_g, ln2_b, w1, b1, w2, b2) = block_params
    B, S = token_ids.shape
    H = emb.shape[1]
    d = H // num_heads
    x = emb[token_ids] * (H ** 0.5) + pe[:, :S, :]

    def split(t):
        return t.reshape(B, S, num_heads, d).transpose(0, 2, 1, 3
                                                       ).reshape(B * num_heads, S, d)

    def layer(x):
        q = x @ wq.T + bq
        k = x @ wk.T + bk
        v = x @ wv.T + bv
        qh, kh, vh = split(q), split(k), split(v)
        score = jnp.einsum('bqd,bkd->bqk', qh, kh) / (d ** 0.5)
        t = jnp.einsum('bqk,bkd->bqd', score, vh)
        att = jax.nn.softmax(t, axis=-1)
        att = att.reshape(B, num_heads, S, d).transpose(0, 2, 1, 3).reshape(B, S, H)
        out1 = att @ wo.T + bo
        res1 = out1 + _layer_norm(out1, ln1_g, ln1_b)
        fusion = out1 + res1
        ffn = jnp.maximum(fusion @ w1.T + b1, 0.0) @ w2.T + b2
        out2 = ffn + _layer_norm(ffn, ln1_g, ln1_b)
        res2 = (fusion + _layer_norm(fusion, ln2_g, ln2_b)) + out2
        return out2 + res2

    for _ in range(layer_num):
        x = layer(x)
    return x


if __name__ == "__main__":
    B, S = 2, 8            # batch, sequence length
    vocab = 50             # dict_capacity
    H = 32                 # embedding_dim == num_hidden
    heads = 4
    ffn_hidden = 64
    max_len = 16           # max_coding_len
    layer_num = 2

    key = jax.random.PRNGKey(0)
    k_ids, k_params = jax.random.split(key)
    token_ids = jax.random.randint(k_ids, (B, S), 0, vocab, dtype=jnp.int32)
    emb, block_params = init_params(k_params, H, ffn_hidden, vocab)
    emb_scaled, packed = pack_params(emb, block_params)  # one-time host prep
    pe = make_positional_encoding(max_len, H)

    out = transformer_encoder(token_ids, emb_scaled, packed, pe, heads, layer_num)
    out = jax.block_until_ready(out)
    assert out.shape == (B, S, H) and out.dtype == jnp.float32
    assert bool(jnp.all(jnp.isfinite(out)))

    # Validate against the pure-JAX reference.  Tolerance is normalized and
    # loose because XLA and Mosaic may use different f32 MXU accumulation
    # algorithms; a real semantic bug produces O(1) normalized error.
    ref = jax.block_until_ready(
        reference_forward(token_ids, emb, block_params, pe, heads, layer_num))
    max_err = float(jnp.max(jnp.abs(out - ref)))
    ref_mag = float(jnp.max(jnp.abs(ref)))
    assert np.isfinite(max_err) and max_err <= 0.05 * max(ref_mag, 1.0), (
        f"mismatch: max_err={max_err}, ref_mag={ref_mag}")

    print("KERNEL_OK")
</pallas_src>

<mosaic_0001>
module attributes {stable_mosaic.version = 11 : i64} {
  func.func @encoder_stack_kernel(%arg0: memref<2x8x32xf32, #tpu.memory_space<vmem>>, %arg1: memref<8x32xf32, #tpu.memory_space<vmem>>, %arg2: memref<32x96xf32, #tpu.memory_space<vmem>>, %arg3: memref<1x96xf32, #tpu.memory_space<vmem>>, %arg4: memref<32x32xf32, #tpu.memory_space<vmem>>, %arg5: memref<32x64xf32, #tpu.memory_space<vmem>>, %arg6: memref<1x64xf32, #tpu.memory_space<vmem>>, %arg7: memref<64x32xf32, #tpu.memory_space<vmem>>, %arg8: memref<6x32xf32, #tpu.memory_space<vmem>>, %arg9: memref<2x8x32xf32, #tpu.memory_space<vmem>>) attributes {dimension_semantics = [], scalar_prefetch = 0 : i64, scratch_operands = 0 : i64, tpu.core_type = #tpu.core_type<tc>} {
    %c0 = arith.constant 0 : index
    %c0_0 = arith.constant 0 : index
    %0 = vector.load %arg2[%c0, %c0_0] : memref<32x96xf32, #tpu.memory_space<vmem>>, vector<32x96xf32>
    %c0_1 = arith.constant 0 : index
    %c0_2 = arith.constant 0 : index
    %1 = vector.load %arg3[%c0_1, %c0_2] : memref<1x96xf32, #tpu.memory_space<vmem>>, vector<1x96xf32>
    %c0_3 = arith.constant 0 : index
    %c0_4 = arith.constant 0 : index
    %2 = vector.load %arg4[%c0_3, %c0_4] : memref<32x32xf32, #tpu.memory_space<vmem>>, vector<32x32xf32>
    %c0_5 = arith.constant 0 : index
    %c0_6 = arith.constant 0 : index
    %3 = vector.load %arg5[%c0_5, %c0_6] : memref<32x64xf32, #tpu.memory_space<vmem>>, vector<32x64xf32>
    %c0_7 = arith.constant 0 : index
    %c0_8 = arith.constant 0 : index
    %4 = vector.load %arg6[%c0_7, %c0_8] : memref<1x64xf32, #tpu.memory_space<vmem>>, vector<1x64xf32>
    %c0_9 = arith.constant 0 : index
    %c0_10 = arith.constant 0 : index
    %5 = vector.load %arg7[%c0_9, %c0_10] : memref<64x32xf32, #tpu.memory_space<vmem>>, vector<64x32xf32>
    %c0_11 = arith.constant 0 : index
    %c0_12 = arith.constant 0 : index
    %6 = vector.load %arg8[%c0_11, %c0_12] : memref<6x32xf32, #tpu.memory_space<vmem>>, vector<6x32xf32>
    %7 = vector.extract_strided_slice %6 {offsets = [0, 0], sizes = [1, 32], strides = [1, 1]} : vector<6x32xf32> to vector<1x32xf32>
    %8 = vector.extract_strided_slice %6 {offsets = [1, 0], sizes = [1, 32], strides = [1, 1]} : vector<6x32xf32> to vector<1x32xf32>
    %9 = vector.extract_strided_slice %6 {offsets = [2, 0], sizes = [1, 32], strides = [1, 1]} : vector<6x32xf32> to vector<1x32xf32>
    %10 = vector.extract_strided_slice %6 {offsets = [3, 0], sizes = [1, 32], strides = [1, 1]} : vector<6x32xf32> to vector<1x32xf32>
    %11 = vector.extract_strided_slice %6 {offsets = [4, 0], sizes = [1, 32], strides = [1, 1]} : vector<6x32xf32> to vector<1x32xf32>
    %12 = vector.extract_strided_slice %6 {offsets = [5, 0], sizes = [1, 32], strides = [1, 1]} : vector<6x32xf32> to vector<1x32xf32>
    %c0_13 = arith.constant 0 : index
    %c0_14 = arith.constant 0 : index
    %c0_15 = arith.constant 0 : index
    %13 = vector.load %arg0[%c0_13, %c0_14, %c0_15] : memref<2x8x32xf32, #tpu.memory_space<vmem>>, vector<2x8x32xf32>
    %c0_16 = arith.constant 0 : index
    %c0_17 = arith.constant 0 : index
    %14 = vector.load %arg1[%c0_16, %c0_17] : memref<8x32xf32, #tpu.memory_space<vmem>>, vector<8x32xf32>
    %15 = vector.shape_cast %14 : vector<8x32xf32> to vector<1x8x32xf32>
    %16 = vector.broadcast %15 : vector<1x8x32xf32> to vector<2x8x32xf32>
    %17 = arith.addf %13, %16 : vector<2x8x32xf32>
    %18 = vector.shape_cast %17 : vector<2x8x32xf32> to vector<16x32xf32>
    %cst = arith.constant dense<0.000000e+00> : vector<16x96xf32>
    %19 = tpu.matmul %18, %0, %cst {dimension_numbers = #tpu.dot_dimension_numbers<[1], [0], [0], [1], [0, 0, 1, 1], [], []>} : vector<16x32xf32>, vector<32x96xf32>, vector<16x96xf32> -> vector<16x96xf32>
    %20 = vector.broadcast %1 : vector<1x96xf32> to vector<16x96xf32>
    %21 = arith.addf %19, %20 : vector<16x96xf32>
    %22 = vector.shape_cast %21 : vector<16x96xf32> to vector<2x8x96xf32>
    %23 = vector.extract_strided_slice %22 {offsets = [0, 0, 0], sizes = [2, 8, 8], strides = [1, 1, 1]} : vector<2x8x96xf32> to vector<2x8x8xf32>
    %24 = vector.extract_strided_slice %22 {offsets = [0, 0, 32], sizes = [2, 8, 8], strides = [1, 1, 1]} : vector<2x8x96xf32> to vector<2x8x8xf32>
    %25 = vector.extract_strided_slice %22 {offsets = [0, 0, 64], sizes = [2, 8, 8], strides = [1, 1, 1]} : vector<2x8x96xf32> to vector<2x8x8xf32>
    "tpu.trace_start"() <{level = 10 : i32, message = "bqd,bkd->bqk"}> : () -> ()
    %cst_18 = arith.constant dense<0.000000e+00> : vector<2x8x8xf32>
    %26 = tpu.matmul %23, %24, %cst_18 {dimension_numbers = #tpu.dot_dimension_numbers<[2], [2], [1], [1], [0, 0, 0, 1, 1, 1], [0], [0]>} : vector<2x8x8xf32>, vector<2x8x8xf32>, vector<2x8x8xf32> -> vector<2x8x8xf32>
    "tpu.trace_stop"() : () -> ()
    %cst_19 = arith.constant 0.353553385 : f32
    %27 = vector.broadcast %cst_19 : f32 to vector<2x8x8xf32>
    %28 = arith.mulf %26, %27 : vector<2x8x8xf32>
    "tpu.trace_start"() <{level = 10 : i32, message = "bqk,bkd->bqd"}> : () -> ()
    %cst_20 = arith.constant dense<0.000000e+00> : vector<2x8x8xf32>
    %29 = tpu.matmul %28, %25, %cst_20 {dimension_numbers = #tpu.dot_dimension_numbers<[2], [1], [1], [2], [0, 0, 0, 1, 1, 2], [0], [0]>} : vector<2x8x8xf32>, vector<2x8x8xf32>, vector<2x8x8xf32> -> vector<2x8x8xf32>
    "tpu.trace_stop"() : () -> ()
    %cst_21 = arith.constant dense<0xFF800000> : vector<2x8xf32>
    %30 = vector.multi_reduction <maximumf>, %29, %cst_21 [2] : vector<2x8x8xf32> to vector<2x8xf32>
    %31 = vector.shape_cast %30 : vector<2x8xf32> to vector<2x8x1xf32>
    %32 = vector.broadcast %31 : vector<2x8x1xf32> to vector<2x8x8xf32>
    %33 = arith.subf %29, %32 : vector<2x8x8xf32>
    %34 = math.exp %33 : vector<2x8x8xf32>
    %cst_22 = arith.constant dense<0.000000e+00> : vector<2x8xf32>
    %35 = vector.multi_reduction <add>, %34, %cst_22 [2] : vector<2x8x8xf32> to vector<2x8xf32>
    %36 = vector.shape_cast %35 : vector<2x8xf32> to vector<2x8x1xf32>
    %37 = tpu.reciprocal %36 {approx = true} : vector<2x8x1xf32> -> vector<2x8x1xf32>
    %38 = vector.broadcast %37 : vector<2x8x1xf32> to vector<2x8x8xf32>
    %39 = arith.mulf %34, %38 : vector<2x8x8xf32>
    %40 = vector.extract_strided_slice %22 {offsets = [0, 0, 8], sizes = [2, 8, 8], strides = [1, 1, 1]} : vector<2x8x96xf32> to vector<2x8x8xf32>
    %41 = vector.extract_strided_slice %22 {offsets = [0, 0, 40], sizes = [2, 8, 8], strides = [1, 1, 1]} : vector<2x8x96xf32> to vector<2x8x8xf32>
    %42 = vector.extract_strided_slice %22 {offsets = [0, 0, 72], sizes = [2, 8, 8], strides = [1, 1, 1]} : vector<2x8x96xf32> to vector<2x8x8xf32>
    "tpu.trace_start"() <{level = 10 : i32, message = "bqd,bkd->bqk"}> : () -> ()
    %cst_23 = arith.constant dense<0.000000e+00> : vector<2x8x8xf32>
    %43 = tpu.matmul %40, %41, %cst_23 {dimension_numbers = #tpu.dot_dimension_numbers<[2], [2], [1], [1], [0, 0, 0, 1, 1, 1], [0], [0]>} : vector<2x8x8xf32>, vector<2x8x8xf32>, vector<2x8x8xf32> -> vector<2x8x8xf32>
    "tpu.trace_stop"() : () -> ()
    %cst_24 = arith.constant 0.353553385 : f32
    %44 = vector.broadcast %cst_24 : f32 to vector<2x8x8xf32>
    %45 = arith.mulf %43, %44 : vector<2x8x8xf32>
    "tpu.trace_start"() <{level = 10 : i32, message = "bqk,bkd->bqd"}> : () -> ()
    %cst_25 = arith.constant dense<0.000000e+00> : vector<2x8x8xf32>
    %46 = tpu.matmul %45, %42, %cst_25 {dimension_numbers = #tpu.dot_dimension_numbers<[2], [1], [1], [2], [0, 0, 0, 1, 1, 2], [0], [0]>} : vector<2x8x8xf32>, vector<2x8x8xf32>, vector<2x8x8xf32> -> vector<2x8x8xf32>
    "tpu.trace_stop"() : () -> ()
    %cst_26 = arith.constant dense<0xFF800000> : vector<2x8xf32>
    %47 = vector.multi_reduction <maximumf>, %46, %cst_26 [2] : vector<2x8x8xf32> to vector<2x8xf32>
    %48 = vector.shape_cast %47 : vector<2x8xf32> to vector<2x8x1xf32>
    %49 = vector.broadcast %48 : vector<2x8x1xf32> to vector<2x8x8xf32>
    %50 = arith.subf %46, %49 : vector<2x8x8xf32>
    %51 = math.exp %50 : vector<2x8x8xf32>
    %cst_27 = arith.constant dense<0.000000e+00> : vector<2x8xf32>
    %52 = vector.multi_reduction <add>, %51, %cst_27 [2] : vector<2x8x8xf32> to vector<2x8xf32>
    %53 = vector.shape_cast %52 : vector<2x8xf32> to vector<2x8x1xf32>
    %54 = tpu.reciprocal %53 {approx = true} : vector<2x8x1xf32> -> vector<2x8x1xf32>
    %55 = vector.broadcast %54 : vector<2x8x1xf32> to vector<2x8x8xf32>
    %56 = arith.mulf %51, %55 : vector<2x8x8xf32>
    %57 = vector.extract_strided_slice %22 {offsets = [0, 0, 16], sizes = [2, 8, 8], strides = [1, 1, 1]} : vector<2x8x96xf32> to vector<2x8x8xf32>
    %58 = vector.extract_strided_slice %22 {offsets = [0, 0, 48], sizes = [2, 8, 8], strides = [1, 1, 1]} : vector<2x8x96xf32> to vector<2x8x8xf32>
    %59 = vector.extract_strided_slice %22 {offsets = [0, 0, 80], sizes = [2, 8, 8], strides = [1, 1, 1]} : vector<2x8x96xf32> to vector<2x8x8xf32>
    "tpu.trace_start"() <{level = 10 : i32, message = "bqd,bkd->bqk"}> : () -> ()
    %cst_28 = arith.constant dense<0.000000e+00> : vector<2x8x8xf32>
    %60 = tpu.matmul %57, %58, %cst_28 {dimension_numbers = #tpu.dot_dimension_numbers<[2], [2], [1], [1], [0, 0, 0, 1, 1, 1], [0], [0]>} : vector<2x8x8xf32>, vector<2x8x8xf32>, vector<2x8x8xf32> -> vector<2x8x8xf32>
    "tpu.trace_stop"() : () -> ()
    %cst_29 = arith.constant 0.353553385 : f32
    %61 = vector.broadcast %cst_29 : f32 to vector<2x8x8xf32>
    %62 = arith.mulf %60, %61 : vector<2x8x8xf32>
    "tpu.trace_start"() <{level = 10 : i32, message = "bqk,bkd->bqd"}> : () -> ()
    %cst_30 = arith.constant dense<0.000000e+00> : vector<2x8x8xf32>
    %63 = tpu.matmul %62, %59, %cst_30 {dimension_numbers = #tpu.dot_dimension_numbers<[2], [1], [1], [2], [0, 0, 0, 1, 1, 2], [0], [0]>} : vector<2x8x8xf32>, vector<2x8x8xf32>, vector<2x8x8xf32> -> vector<2x8x8xf32>
    "tpu.trace_stop"() : () -> ()
    %cst_31 = arith.constant dense<0xFF800000> : vector<2x8xf32>
    %64 = vector.multi_reduction <maximumf>, %63, %cst_31 [2] : vector<2x8x8xf32> to vector<2x8xf32>
    %65 = vector.shape_cast %64 : vector<2x8xf32> to vector<2x8x1xf32>
    %66 = vector.broadcast %65 : vector<2x8x1xf32> to vector<2x8x8xf32>
    %67 = arith.subf %63, %66 : vector<2x8x8xf32>
    %68 = math.exp %67 : vector<2x8x8xf32>
    %cst_32 = arith.constant dense<0.000000e+00> : vector<2x8xf32>
    %69 = vector.multi_reduction <add>, %68, %cst_32 [2] : vector<2x8x8xf32> to vector<2x8xf32>
    %70 = vector.shape_cast %69 : vector<2x8xf32> to vector<2x8x1xf32>
    %71 = tpu.reciprocal %70 {approx = true} : vector<2x8x1xf32> -> vector<2x8x1xf32>
    %72 = vector.broadcast %71 : vector<2x8x1xf32> to vector<2x8x8xf32>
    %73 = arith.mulf %68, %72 : vector<2x8x8xf32>
    %74 = vector.extract_strided_slice %22 {offsets = [0, 0, 24], sizes = [2, 8, 8], strides = [1, 1, 1]} : vector<2x8x96xf32> to vector<2x8x8xf32>
    %75 = vector.extract_strided_slice %22 {offsets = [0, 0, 56], sizes = [2, 8, 8], strides = [1, 1, 1]} : vector<2x8x96xf32> to vector<2x8x8xf32>
    %76 = vector.extract_strided_slice %22 {offsets = [0, 0, 88], sizes = [2, 8, 8], strides = [1, 1, 1]} : vector<2x8x96xf32> to vector<2x8x8xf32>
    "tpu.trace_start"() <{level = 10 : i32, message = "bqd,bkd->bqk"}> : () -> ()
    %cst_33 = arith.constant dense<0.000000e+00> : vector<2x8x8xf32>
    %77 = tpu.matmul %74, %75, %cst_33 {dimension_numbers = #tpu.dot_dimension_numbers<[2], [2], [1], [1], [0, 0, 0, 1, 1, 1], [0], [0]>} : vector<2x8x8xf32>, vector<2x8x8xf32>, vector<2x8x8xf32> -> vector<2x8x8xf32>
    "tpu.trace_stop"() : () -> ()
    %cst_34 = arith.constant 0.353553385 : f32
    %78 = vector.broadcast %cst_34 : f32 to vector<2x8x8xf32>
    %79 = arith.mulf %77, %78 : vector<2x8x8xf32>
    "tpu.trace_start"() <{level = 10 : i32, message = "bqk,bkd->bqd"}> : () -> ()
    %cst_35 = arith.constant dense<0.000000e+00> : vector<2x8x8xf32>
    %80 = tpu.matmul %79, %76, %cst_35 {dimension_numbers = #tpu.dot_dimension_numbers<[2], [1], [1], [2], [0, 0, 0, 1, 1, 2], [0], [0]>} : vector<2x8x8xf32>, vector<2x8x8xf32>, vector<2x8x8xf32> -> vector<2x8x8xf32>
    "tpu.trace_stop"() : () -> ()
    %cst_36 = arith.constant dense<0xFF800000> : vector<2x8xf32>
    %81 = vector.multi_reduction <maximumf>, %80, %cst_36 [2] : vector<2x8x8xf32> to vector<2x8xf32>
    %82 = vector.shape_cast %81 : vector<2x8xf32> to vector<2x8x1xf32>
    %83 = vector.broadcast %82 : vector<2x8x1xf32> to vector<2x8x8xf32>
    %84 = arith.subf %80, %83 : vector<2x8x8xf32>
    %85 = math.exp %84 : vector<2x8x8xf32>
    %cst_37 = arith.constant dense<0.000000e+00> : vector<2x8xf32>
    %86 = vector.multi_reduction <add>, %85, %cst_37 [2] : vector<2x8x8xf32> to vector<2x8xf32>
    %87 = vector.shape_cast %86 : vector<2x8xf32> to vector<2x8x1xf32>
    %88 = tpu.reciprocal %87 {approx = true} : vector<2x8x1xf32> -> vector<2x8x1xf32>
    %89 = vector.broadcast %88 : vector<2x8x1xf32> to vector<2x8x8xf32>
    %90 = arith.mulf %85, %89 : vector<2x8x8xf32>
    %91 = tpu.concatenate %39, %56, %73, %90 in 2 : vector<2x8x8xf32>, vector<2x8x8xf32>, vector<2x8x8xf32>, vector<2x8x8xf32> -> vector<2x8x32xf32>
    %92 = vector.shape_cast %91 : vector<2x8x32xf32> to vector<16x32xf32>
    %cst_38 = arith.constant dense<0.000000e+00> : vector<16x32xf32>
    %93 = tpu.matmul %92, %2, %cst_38 {dimension_numbers = #tpu.dot_dimension_numbers<[1], [0], [0], [1], [0, 0, 1, 1], [], []>} : vector<16x32xf32>, vector<32x32xf32>, vector<16x32xf32> -> vector<16x32xf32>
    %94 = vector.broadcast %7 : vector<1x32xf32> to vector<16x32xf32>
    %95 = arith.addf %93, %94 : vector<16x32xf32>
    %cst_39 = arith.constant dense<0.000000e+00> : vector<16xf32>
    %96 = vector.multi_reduction <add>, %95, %cst_39 [1] : vector<16x32xf32> to vector<16xf32>
    %97 = vector.shape_cast %96 : vector<16xf32> to vector<16x1xf32>
    %cst_40 = arith.constant 3.200000e+01 : f32
    %98 = vector.broadcast %cst_40 : f32 to vector<16x1xf32>
    %99 = arith.divf %97, %98 : vector<16x1xf32>
    %100 = vector.broadcast %99 : vector<16x1xf32> to vector<16x32xf32>
    %101 = arith.subf %95, %100 : vector<16x32xf32>
    %102 = arith.mulf %101, %101 : vector<16x32xf32>
    %cst_41 = arith.constant dense<0.000000e+00> : vector<16xf32>
    %103 = vector.multi_reduction <add>, %102, %cst_41 [1] : vector<16x32xf32> to vector<16xf32>
    %104 = vector.shape_cast %103 : vector<16xf32> to vector<16x1xf32>
    %cst_42 = arith.constant 3.200000e+01 : f32
    %105 = vector.broadcast %cst_42 : f32 to vector<16x1xf32>
    %106 = arith.divf %104, %105 : vector<16x1xf32>
    %107 = vector.broadcast %99 : vector<16x1xf32> to vector<16x32xf32>
    %108 = arith.subf %95, %107 : vector<16x32xf32>
    %cst_43 = arith.constant 9.99999974E-6 : f32
    %109 = vector.broadcast %cst_43 : f32 to vector<16x1xf32>
    %110 = arith.addf %106, %109 : vector<16x1xf32>
    %111 = math.rsqrt %110 : vector<16x1xf32>
    %112 = vector.broadcast %111 : vector<16x1xf32> to vector<16x32xf32>
    %113 = arith.mulf %108, %112 : vector<16x32xf32>
    %114 = vector.broadcast %8 : vector<1x32xf32> to vector<16x32xf32>
    %115 = arith.mulf %113, %114 : vector<16x32xf32>
    %116 = vector.broadcast %9 : vector<1x32xf32> to vector<16x32xf32>
    %117 = arith.addf %115, %116 : vector<16x32xf32>
    %118 = arith.addf %95, %117 : vector<16x32xf32>
    %119 = arith.addf %95, %118 : vector<16x32xf32>
    %cst_44 = arith.constant dense<0.000000e+00> : vector<16x64xf32>
    %120 = tpu.matmul %119, %3, %cst_44 {dimension_numbers = #tpu.dot_dimension_numbers<[1], [0], [0], [1], [0, 0, 1, 1], [], []>} : vector<16x32xf32>, vector<32x64xf32>, vector<16x64xf32> -> vector<16x64xf32>
    %121 = vector.broadcast %4 : vector<1x64xf32> to vector<16x64xf32>
    %122 = arith.addf %120, %121 : vector<16x64xf32>
    %cst_45 = arith.constant 0.000000e+00 : f32
    %123 = vector.broadcast %cst_45 : f32 to vector<16x64xf32>
    %124 = arith.maximumf %122, %123 : vector<16x64xf32>
    %cst_46 = arith.constant dense<0.000000e+00> : vector<16x32xf32>
    %125 = tpu.matmul %124, %5, %cst_46 {dimension_numbers = #tpu.dot_dimension_numbers<[1], [0], [0], [1], [0, 0, 1, 1], [], []>} : vector<16x64xf32>, vector<64x32xf32>, vector<16x32xf32> -> vector<16x32xf32>
    %126 = vector.broadcast %12 : vector<1x32xf32> to vector<16x32xf32>
    %127 = arith.addf %125, %126 : vector<16x32xf32>
    %cst_47 = arith.constant dense<0.000000e+00> : vector<16xf32>
    %128 = vector.multi_reduction <add>, %127, %cst_47 [1] : vector<16x32xf32> to vector<16xf32>
    %129 = vector.shape_cast %128 : vector<16xf32> to vector<16x1xf32>
    %cst_48 = arith.constant 3.200000e+01 : f32
    %130 = vector.broadcast %cst_48 : f32 to vector<16x1xf32>
    %131 = arith.divf %129, %130 : vector<16x1xf32>
    %132 = vector.broadcast %131 : vector<16x1xf32> to vector<16x32xf32>
    %133 = arith.subf %127, %132 : vector<16x32xf32>
    %134 = arith.mulf %133, %133 : vector<16x32xf32>
    %cst_49 = arith.constant dense<0.000000e+00> : vector<16xf32>
    %135 = vector.multi_reduction <add>, %134, %cst_49 [1] : vector<16x32xf32> to vector<16xf32>
    %136 = vector.shape_cast %135 : vector<16xf32> to vector<16x1xf32>
    %cst_50 = arith.constant 3.200000e+01 : f32
    %137 = vector.broadcast %cst_50 : f32 to vector<16x1xf32>
    %138 = arith.divf %136, %137 : vector<16x1xf32>
    %139 = vector.broadcast %131 : vector<16x1xf32> to vector<16x32xf32>
    %140 = arith.subf %127, %139 : vector<16x32xf32>
    %cst_51 = arith.constant 9.99999974E-6 : f32
    %141 = vector.broadcast %cst_51 : f32 to vector<16x1xf32>
    %142 = arith.addf %138, %141 : vector<16x1xf32>
    %143 = math.rsqrt %142 : vector<16x1xf32>
    %144 = vector.broadcast %143 : vector<16x1xf32> to vector<16x32xf32>
    %145 = arith.mulf %140, %144 : vector<16x32xf32>
    %146 = vector.broadcast %8 : vector<1x32xf32> to vector<16x32xf32>
    %147 = arith.mulf %145, %146 : vector<16x32xf32>
    %148 = vector.broadcast %9 : vector<1x32xf32> to vector<16x32xf32>
    %149 = arith.addf %147, %148 : vector<16x32xf32>
    %150 = arith.addf %127, %149 : vector<16x32xf32>
    %cst_52 = arith.constant dense<0.000000e+00> : vector<16xf32>
    %151 = vector.multi_reduction <add>, %119, %cst_52 [1] : vector<16x32xf32> to vector<16xf32>
    %152 = vector.shape_cast %151 : vector<16xf32> to vector<16x1xf32>
    %cst_53 = arith.constant 3.200000e+01 : f32
    %153 = vector.broadcast %cst_53 : f32 to vector<16x1xf32>
    %154 = arith.divf %152, %153 : vector<16x1xf32>
    %155 = vector.broadcast %154 : vector<16x1xf32> to vector<16x32xf32>
    %156 = arith.subf %119, %155 : vector<16x32xf32>
    %157 = arith.mulf %156, %156 : vector<16x32xf32>
    %cst_54 = arith.constant dense<0.000000e+00> : vector<16xf32>
    %158 = vector.multi_reduction <add>, %157, %cst_54 [1] : vector<16x32xf32> to vector<16xf32>
    %159 = vector.shape_cast %158 : vector<16xf32> to vector<16x1xf32>
    %cst_55 = arith.constant 3.200000e+01 : f32
    %160 = vector.broadcast %cst_55 : f32 to vector<16x1xf32>
    %161 = arith.divf %159, %160 : vector<16x1xf32>
    %162 = vector.broadcast %154 : vector<16x1xf32> to vector<16x32xf32>
    %163 = arith.subf %119, %162 : vector<16x32xf32>
    %cst_56 = arith.constant 9.99999974E-6 : f32
    %164 = vector.broadcast %cst_56 : f32 to vector<16x1xf32>
    %165 = arith.addf %161, %164 : vector<16x1xf32>
    %166 = math.rsqrt %165 : vector<16x1xf32>
    %167 = vector.broadcast %166 : vector<16x1xf32> to vector<16x32xf32>
    %168 = arith.mulf %163, %167 : vector<16x32xf32>
    %169 = vector.broadcast %10 : vector<1x32xf32> to vector<16x32xf32>
    %170 = arith.mulf %168, %169 : vector<16x32xf32>
    %171 = vector.broadcast %11 : vector<1x32xf32> to vector<16x32xf32>
    %172 = arith.addf %170, %171 : vector<16x32xf32>
    %173 = arith.addf %119, %172 : vector<16x32xf32>
    %174 = arith.addf %173, %150 : vector<16x32xf32>
    %175 = arith.addf %150, %174 : vector<16x32xf32>
    %cst_57 = arith.constant dense<0.000000e+00> : vector<16x96xf32>
    %176 = tpu.matmul %175, %0, %cst_57 {dimension_numbers = #tpu.dot_dimension_numbers<[1], [0], [0], [1], [0, 0, 1, 1], [], []>} : vector<16x32xf32>, vector<32x96xf32>, vector<16x96xf32> -> vector<16x96xf32>
    %177 = vector.broadcast %1 : vector<1x96xf32> to vector<16x96xf32>
    %178 = arith.addf %176, %177 : vector<16x96xf32>
    %179 = vector.shape_cast %178 : vector<16x96xf32> to vector<2x8x96xf32>
    %180 = vector.extract_strided_slice %179 {offsets = [0, 0, 0], sizes = [2, 8, 8], strides = [1, 1, 1]} : vector<2x8x96xf32> to vector<2x8x8xf32>
    %181 = vector.extract_strided_slice %179 {offsets = [0, 0, 32], sizes = [2, 8, 8], strides = [1, 1, 1]} : vector<2x8x96xf32> to vector<2x8x8xf32>
    %182 = vector.extract_strided_slice %179 {offsets = [0, 0, 64], sizes = [2, 8, 8], strides = [1, 1, 1]} : vector<2x8x96xf32> to vector<2x8x8xf32>
    "tpu.trace_start"() <{level = 10 : i32, message = "bqd,bkd->bqk"}> : () -> ()
    %cst_58 = arith.constant dense<0.000000e+00> : vector<2x8x8xf32>
    %183 = tpu.matmul %180, %181, %cst_58 {dimension_numbers = #tpu.dot_dimension_numbers<[2], [2], [1], [1], [0, 0, 0, 1, 1, 1], [0], [0]>} : vector<2x8x8xf32>, vector<2x8x8xf32>, vector<2x8x8xf32> -> vector<2x8x8xf32>
    "tpu.trace_stop"() : () -> ()
    %cst_59 = arith.constant 0.353553385 : f32
    %184 = vector.broadcast %cst_59 : f32 to vector<2x8x8xf32>
    %185 = arith.mulf %183, %184 : vector<2x8x8xf32>
    "tpu.trace_start"() <{level = 10 : i32, message = "bqk,bkd->bqd"}> : () -> ()
    %cst_60 = arith.constant dense<0.000000e+00> : vector<2x8x8xf32>
    %186 = tpu.matmul %185, %182, %cst_60 {dimension_numbers = #tpu.dot_dimension_numbers<[2], [1], [1], [2], [0, 0, 0, 1, 1, 2], [0], [0]>} : vector<2x8x8xf32>, vector<2x8x8xf32>, vector<2x8x8xf32> -> vector<2x8x8xf32>
    "tpu.trace_stop"() : () -> ()
    %cst_61 = arith.constant dense<0xFF800000> : vector<2x8xf32>
    %187 = vector.multi_reduction <maximumf>, %186, %cst_61 [2] : vector<2x8x8xf32> to vector<2x8xf32>
    %188 = vector.shape_cast %187 : vector<2x8xf32> to vector<2x8x1xf32>
    %189 = vector.broadcast %188 : vector<2x8x1xf32> to vector<2x8x8xf32>
    %190 = arith.subf %186, %189 : vector<2x8x8xf32>
    %191 = math.exp %190 : vector<2x8x8xf32>
    %cst_62 = arith.constant dense<0.000000e+00> : vector<2x8xf32>
    %192 = vector.multi_reduction <add>, %191, %cst_62 [2] : vector<2x8x8xf32> to vector<2x8xf32>
    %193 = vector.shape_cast %192 : vector<2x8xf32> to vector<2x8x1xf32>
    %194 = tpu.reciprocal %193 {approx = true} : vector<2x8x1xf32> -> vector<2x8x1xf32>
    %195 = vector.broadcast %194 : vector<2x8x1xf32> to vector<2x8x8xf32>
    %196 = arith.mulf %191, %195 : vector<2x8x8xf32>
    %197 = vector.extract_strided_slice %179 {offsets = [0, 0, 8], sizes = [2, 8, 8], strides = [1, 1, 1]} : vector<2x8x96xf32> to vector<2x8x8xf32>
    %198 = vector.extract_strided_slice %179 {offsets = [0, 0, 40], sizes = [2, 8, 8], strides = [1, 1, 1]} : vector<2x8x96xf32> to vector<2x8x8xf32>
    %199 = vector.extract_strided_slice %179 {offsets = [0, 0, 72], sizes = [2, 8, 8], strides = [1, 1, 1]} : vector<2x8x96xf32> to vector<2x8x8xf32>
    "tpu.trace_start"() <{level = 10 : i32, message = "bqd,bkd->bqk"}> : () -> ()
    %cst_63 = arith.constant dense<0.000000e+00> : vector<2x8x8xf32>
    %200 = tpu.matmul %197, %198, %cst_63 {dimension_numbers = #tpu.dot_dimension_numbers<[2], [2], [1], [1], [0, 0, 0, 1, 1, 1], [0], [0]>} : vector<2x8x8xf32>, vector<2x8x8xf32>, vector<2x8x8xf32> -> vector<2x8x8xf32>
    "tpu.trace_stop"() : () -> ()
    %cst_64 = arith.constant 0.353553385 : f32
    %201 = vector.broadcast %cst_64 : f32 to vector<2x8x8xf32>
    %202 = arith.mulf %200, %201 : vector<2x8x8xf32>
    "tpu.trace_start"() <{level = 10 : i32, message = "bqk,bkd->bqd"}> : () -> ()
    %cst_65 = arith.constant dense<0.000000e+00> : vector<2x8x8xf32>
    %203 = tpu.matmul %202, %199, %cst_65 {dimension_numbers = #tpu.dot_dimension_numbers<[2], [1], [1], [2], [0, 0, 0, 1, 1, 2], [0], [0]>} : vector<2x8x8xf32>, vector<2x8x8xf32>, vector<2x8x8xf32> -> vector<2x8x8xf32>
    "tpu.trace_stop"() : () -> ()
    %cst_66 = arith.constant dense<0xFF800000> : vector<2x8xf32>
    %204 = vector.multi_reduction <maximumf>, %203, %cst_66 [2] : vector<2x8x8xf32> to vector<2x8xf32>
    %205 = vector.shape_cast %204 : vector<2x8xf32> to vector<2x8x1xf32>
    %206 = vector.broadcast %205 : vector<2x8x1xf32> to vector<2x8x8xf32>
    %207 = arith.subf %203, %206 : vector<2x8x8xf32>
    %208 = math.exp %207 : vector<2x8x8xf32>
    %cst_67 = arith.constant dense<0.000000e+00> : vector<2x8xf32>
    %209 = vector.multi_reduction <add>, %208, %cst_67 [2] : vector<2x8x8xf32> to vector<2x8xf32>
    %210 = vector.shape_cast %209 : vector<2x8xf32> to vector<2x8x1xf32>
    %211 = tpu.reciprocal %210 {approx = true} : vector<2x8x1xf32> -> vector<2x8x1xf32>
    %212 = vector.broadcast %211 : vector<2x8x1xf32> to vector<2x8x8xf32>
    %213 = arith.mulf %208, %212 : vector<2x8x8xf32>
    %214 = vector.extract_strided_slice %179 {offsets = [0, 0, 16], sizes = [2, 8, 8], strides = [1, 1, 1]} : vector<2x8x96xf32> to vector<2x8x8xf32>
    %215 = vector.extract_strided_slice %179 {offsets = [0, 0, 48], sizes = [2, 8, 8], strides = [1, 1, 1]} : vector<2x8x96xf32> to vector<2x8x8xf32>
    %216 = vector.extract_strided_slice %179 {offsets = [0, 0, 80], sizes = [2, 8, 8], strides = [1, 1, 1]} : vector<2x8x96xf32> to vector<2x8x8xf32>
    "tpu.trace_start"() <{level = 10 : i32, message = "bqd,bkd->bqk"}> : () -> ()
    %cst_68 = arith.constant dense<0.000000e+00> : vector<2x8x8xf32>
    %217 = tpu.matmul %214, %215, %cst_68 {dimension_numbers = #tpu.dot_dimension_numbers<[2], [2], [1], [1], [0, 0, 0, 1, 1, 1], [0], [0]>} : vector<2x8x8xf32>, vector<2x8x8xf32>, vector<2x8x8xf32> -> vector<2x8x8xf32>
    "tpu.trace_stop"() : () -> ()
    %cst_69 = arith.constant 0.353553385 : f32
    %218 = vector.broadcast %cst_69 : f32 to vector<2x8x8xf32>
    %219 = arith.mulf %217, %218 : vector<2x8x8xf32>
    "tpu.trace_start"() <{level = 10 : i32, message = "bqk,bkd->bqd"}> : () -> ()
    %cst_70 = arith.constant dense<0.000000e+00> : vector<2x8x8xf32>
    %220 = tpu.matmul %219, %216, %cst_70 {dimension_numbers = #tpu.dot_dimension_numbers<[2], [1], [1], [2], [0, 0, 0, 1, 1, 2], [0], [0]>} : vector<2x8x8xf32>, vector<2x8x8xf32>, vector<2x8x8xf32> -> vector<2x8x8xf32>
    "tpu.trace_stop"() : () -> ()
    %cst_71 = arith.constant dense<0xFF800000> : vector<2x8xf32>
    %221 = vector.multi_reduction <maximumf>, %220, %cst_71 [2] : vector<2x8x8xf32> to vector<2x8xf32>
    %222 = vector.shape_cast %221 : vector<2x8xf32> to vector<2x8x1xf32>
    %223 = vector.broadcast %222 : vector<2x8x1xf32> to vector<2x8x8xf32>
    %224 = arith.subf %220, %223 : vector<2x8x8xf32>
    %225 = math.exp %224 : vector<2x8x8xf32>
    %cst_72 = arith.constant dense<0.000000e+00> : vector<2x8xf32>
    %226 = vector.multi_reduction <add>, %225, %cst_72 [2] : vector<2x8x8xf32> to vector<2x8xf32>
    %227 = vector.shape_cast %226 : vector<2x8xf32> to vector<2x8x1xf32>
    %228 = tpu.reciprocal %227 {approx = true} : vector<2x8x1xf32> -> vector<2x8x1xf32>
    %229 = vector.broadcast %228 : vector<2x8x1xf32> to vector<2x8x8xf32>
    %230 = arith.mulf %225, %229 : vector<2x8x8xf32>
    %231 = vector.extract_strided_slice %179 {offsets = [0, 0, 24], sizes = [2, 8, 8], strides = [1, 1, 1]} : vector<2x8x96xf32> to vector<2x8x8xf32>
    %232 = vector.extract_strided_slice %179 {offsets = [0, 0, 56], sizes = [2, 8, 8], strides = [1, 1, 1]} : vector<2x8x96xf32> to vector<2x8x8xf32>
    %233 = vector.extract_strided_slice %179 {offsets = [0, 0, 88], sizes = [2, 8, 8], strides = [1, 1, 1]} : vector<2x8x96xf32> to vector<2x8x8xf32>
    "tpu.trace_start"() <{level = 10 : i32, message = "bqd,bkd->bqk"}> : () -> ()
    %cst_73 = arith.constant dense<0.000000e+00> : vector<2x8x8xf32>
    %234 = tpu.matmul %231, %232, %cst_73 {dimension_numbers = #tpu.dot_dimension_numbers<[2], [2], [1], [1], [0, 0, 0, 1, 1, 1], [0], [0]>} : vector<2x8x8xf32>, vector<2x8x8xf32>, vector<2x8x8xf32> -> vector<2x8x8xf32>
    "tpu.trace_stop"() : () -> ()
    %cst_74 = arith.constant 0.353553385 : f32
    %235 = vector.broadcast %cst_74 : f32 to vector<2x8x8xf32>
    %236 = arith.mulf %234, %235 : vector<2x8x8xf32>
    "tpu.trace_start"() <{level = 10 : i32, message = "bqk,bkd->bqd"}> : () -> ()
    %cst_75 = arith.constant dense<0.000000e+00> : vector<2x8x8xf32>
    %237 = tpu.matmul %236, %233, %cst_75 {dimension_numbers = #tpu.dot_dimension_numbers<[2], [1], [1], [2], [0, 0, 0, 1, 1, 2], [0], [0]>} : vector<2x8x8xf32>, vector<2x8x8xf32>, vector<2x8x8xf32> -> vector<2x8x8xf32>
    "tpu.trace_stop"() : () -> ()
    %cst_76 = arith.constant dense<0xFF800000> : vector<2x8xf32>
    %238 = vector.multi_reduction <maximumf>, %237, %cst_76 [2] : vector<2x8x8xf32> to vector<2x8xf32>
    %239 = vector.shape_cast %238 : vector<2x8xf32> to vector<2x8x1xf32>
    %240 = vector.broadcast %239 : vector<2x8x1xf32> to vector<2x8x8xf32>
    %241 = arith.subf %237, %240 : vector<2x8x8xf32>
    %242 = math.exp %241 : vector<2x8x8xf32>
    %cst_77 = arith.constant dense<0.000000e+00> : vector<2x8xf32>
    %243 = vector.multi_reduction <add>, %242, %cst_77 [2] : vector<2x8x8xf32> to vector<2x8xf32>
    %244 = vector.shape_cast %243 : vector<2x8xf32> to vector<2x8x1xf32>
    %245 = tpu.reciprocal %244 {approx = true} : vector<2x8x1xf32> -> vector<2x8x1xf32>
    %246 = vector.broadcast %245 : vector<2x8x1xf32> to vector<2x8x8xf32>
    %247 = arith.mulf %242, %246 : vector<2x8x8xf32>
    %248 = tpu.concatenate %196, %213, %230, %247 in 2 : vector<2x8x8xf32>, vector<2x8x8xf32>, vector<2x8x8xf32>, vector<2x8x8xf32> -> vector<2x8x32xf32>
    %249 = vector.shape_cast %248 : vector<2x8x32xf32> to vector<16x32xf32>
    %cst_78 = arith.constant dense<0.000000e+00> : vector<16x32xf32>
    %250 = tpu.matmul %249, %2, %cst_78 {dimension_numbers = #tpu.dot_dimension_numbers<[1], [0], [0], [1], [0, 0, 1, 1], [], []>} : vector<16x32xf32>, vector<32x32xf32>, vector<16x32xf32> -> vector<16x32xf32>
    %251 = vector.broadcast %7 : vector<1x32xf32> to vector<16x32xf32>
    %252 = arith.addf %250, %251 : vector<16x32xf32>
    %cst_79 = arith.constant dense<0.000000e+00> : vector<16xf32>
    %253 = vector.multi_reduction <add>, %252, %cst_79 [1] : vector<16x32xf32> to vector<16xf32>
    %254 = vector.shape_cast %253 : vector<16xf32> to vector<16x1xf32>
    %cst_80 = arith.constant 3.200000e+01 : f32
    %255 = vector.broadcast %cst_80 : f32 to vector<16x1xf32>
    %256 = arith.divf %254, %255 : vector<16x1xf32>
    %257 = vector.broadcast %256 : vector<16x1xf32> to vector<16x32xf32>
    %258 = arith.subf %252, %257 : vector<16x32xf32>
    %259 = arith.mulf %258, %258 : vector<16x32xf32>
    %cst_81 = arith.constant dense<0.000000e+00> : vector<16xf32>
    %260 = vector.multi_reduction <add>, %259, %cst_81 [1] : vector<16x32xf32> to vector<16xf32>
    %261 = vector.shape_cast %260 : vector<16xf32> to vector<16x1xf32>
    %cst_82 = arith.constant 3.200000e+01 : f32
    %262 = vector.broadcast %cst_82 : f32 to vector<16x1xf32>
    %263 = arith.divf %261, %262 : vector<16x1xf32>
    %264 = vector.broadcast %256 : vector<16x1xf32> to vector<16x32xf32>
    %265 = arith.subf %252, %264 : vector<16x32xf32>
    %cst_83 = arith.constant 9.99999974E-6 : f32
    %266 = vector.broadcast %cst_83 : f32 to vector<16x1xf32>
    %267 = arith.addf %263, %266 : vector<16x1xf32>
    %268 = math.rsqrt %267 : vector<16x1xf32>
    %269 = vector.broadcast %268 : vector<16x1xf32> to vector<16x32xf32>
    %270 = arith.mulf %265, %269 : vector<16x32xf32>
    %271 = vector.broadcast %8 : vector<1x32xf32> to vector<16x32xf32>
    %272 = arith.mulf %270, %271 : vector<16x32xf32>
    %273 = vector.broadcast %9 : vector<1x32xf32> to vector<16x32xf32>
    %274 = arith.addf %272, %273 : vector<16x32xf32>
    %275 = arith.addf %252, %274 : vector<16x32xf32>
    %276 = arith.addf %252, %275 : vector<16x32xf32>
    %cst_84 = arith.constant dense<0.000000e+00> : vector<16x64xf32>
    %277 = tpu.matmul %276, %3, %cst_84 {dimension_numbers = #tpu.dot_dimension_numbers<[1], [0], [0], [1], [0, 0, 1, 1], [], []>} : vector<16x32xf32>, vector<32x64xf32>, vector<16x64xf32> -> vector<16x64xf32>
    %278 = vector.broadcast %4 : vector<1x64xf32> to vector<16x64xf32>
    %279 = arith.addf %277, %278 : vector<16x64xf32>
    %cst_85 = arith.constant 0.000000e+00 : f32
    %280 = vector.broadcast %cst_85 : f32 to vector<16x64xf32>
    %281 = arith.maximumf %279, %280 : vector<16x64xf32>
    %cst_86 = arith.constant dense<0.000000e+00> : vector<16x32xf32>
    %282 = tpu.matmul %281, %5, %cst_86 {dimension_numbers = #tpu.dot_dimension_numbers<[1], [0], [0], [1], [0, 0, 1, 1], [], []>} : vector<16x64xf32>, vector<64x32xf32>, vector<16x32xf32> -> vector<16x32xf32>
    %283 = vector.broadcast %12 : vector<1x32xf32> to vector<16x32xf32>
    %284 = arith.addf %282, %283 : vector<16x32xf32>
    %cst_87 = arith.constant dense<0.000000e+00> : vector<16xf32>
    %285 = vector.multi_reduction <add>, %284, %cst_87 [1] : vector<16x32xf32> to vector<16xf32>
    %286 = vector.shape_cast %285 : vector<16xf32> to vector<16x1xf32>
    %cst_88 = arith.constant 3.200000e+01 : f32
    %287 = vector.broadcast %cst_88 : f32 to vector<16x1xf32>
    %288 = arith.divf %286, %287 : vector<16x1xf32>
    %289 = vector.broadcast %288 : vector<16x1xf32> to vector<16x32xf32>
    %290 = arith.subf %284, %289 : vector<16x32xf32>
    %291 = arith.mulf %290, %290 : vector<16x32xf32>
    %cst_89 = arith.constant dense<0.000000e+00> : vector<16xf32>
    %292 = vector.multi_reduction <add>, %291, %cst_89 [1] : vector<16x32xf32> to vector<16xf32>
    %293 = vector.shape_cast %292 : vector<16xf32> to vector<16x1xf32>
    %cst_90 = arith.constant 3.200000e+01 : f32
    %294 = vector.broadcast %cst_90 : f32 to vector<16x1xf32>
    %295 = arith.divf %293, %294 : vector<16x1xf32>
    %296 = vector.broadcast %288 : vector<16x1xf32> to vector<16x32xf32>
    %297 = arith.subf %284, %296 : vector<16x32xf32>
    %cst_91 = arith.constant 9.99999974E-6 : f32
    %298 = vector.broadcast %cst_91 : f32 to vector<16x1xf32>
    %299 = arith.addf %295, %298 : vector<16x1xf32>
    %300 = math.rsqrt %299 : vector<16x1xf32>
    %301 = vector.broadcast %300 : vector<16x1xf32> to vector<16x32xf32>
    %302 = arith.mulf %297, %301 : vector<16x32xf32>
    %303 = vector.broadcast %8 : vector<1x32xf32> to vector<16x32xf32>
    %304 = arith.mulf %302, %303 : vector<16x32xf32>
    %305 = vector.broadcast %9 : vector<1x32xf32> to vector<16x32xf32>
    %306 = arith.addf %304, %305 : vector<16x32xf32>
    %307 = arith.addf %284, %306 : vector<16x32xf32>
    %cst_92 = arith.constant dense<0.000000e+00> : vector<16xf32>
    %308 = vector.multi_reduction <add>, %276, %cst_92 [1] : vector<16x32xf32> to vector<16xf32>
    %309 = vector.shape_cast %308 : vector<16xf32> to vector<16x1xf32>
    %cst_93 = arith.constant 3.200000e+01 : f32
    %310 = vector.broadcast %cst_93 : f32 to vector<16x1xf32>
    %311 = arith.divf %309, %310 : vector<16x1xf32>
    %312 = vector.broadcast %311 : vector<16x1xf32> to vector<16x32xf32>
    %313 = arith.subf %276, %312 : vector<16x32xf32>
    %314 = arith.mulf %313, %313 : vector<16x32xf32>
    %cst_94 = arith.constant dense<0.000000e+00> : vector<16xf32>
    %315 = vector.multi_reduction <add>, %314, %cst_94 [1] : vector<16x32xf32> to vector<16xf32>
    %316 = vector.shape_cast %315 : vector<16xf32> to vector<16x1xf32>
    %cst_95 = arith.constant 3.200000e+01 : f32
    %317 = vector.broadcast %cst_95 : f32 to vector<16x1xf32>
    %318 = arith.divf %316, %317 : vector<16x1xf32>
    %319 = vector.broadcast %311 : vector<16x1xf32> to vector<16x32xf32>
    %320 = arith.subf %276, %319 : vector<16x32xf32>
    %cst_96 = arith.constant 9.99999974E-6 : f32
    %321 = vector.broadcast %cst_96 : f32 to vector<16x1xf32>
    %322 = arith.addf %318, %321 : vector<16x1xf32>
    %323 = math.rsqrt %322 : vector<16x1xf32>
    %324 = vector.broadcast %323 : vector<16x1xf32> to vector<16x32xf32>
    %325 = arith.mulf %320, %324 : vector<16x32xf32>
    %326 = vector.broadcast %10 : vector<1x32xf32> to vector<16x32xf32>
    %327 = arith.mulf %325, %326 : vector<16x32xf32>
    %328 = vector.broadcast %11 : vector<1x32xf32> to vector<16x32xf32>
    %329 = arith.addf %327, %328 : vector<16x32xf32>
    %330 = arith.addf %276, %329 : vector<16x32xf32>
    %331 = arith.addf %330, %307 : vector<16x32xf32>
    %332 = arith.addf %307, %331 : vector<16x32xf32>
    %333 = vector.shape_cast %332 : vector<16x32xf32> to vector<2x8x32xf32>
    %c0_97 = arith.constant 0 : index
    %c0_98 = arith.constant 0 : index
    %c0_99 = arith.constant 0 : index
    %334 = vector.load %arg9[%c0_97, %c0_98, %c0_99] : memref<2x8x32xf32, #tpu.memory_space<vmem>>, vector<2x8x32xf32>
    tpu.vector_store %arg9[%c0_97, %c0_98, %c0_99], %333 {strides = array<i32>} : memref<2x8x32xf32, #tpu.memory_space<vmem>>, vector<2x8x32xf32>,
    return
  }
}

</mosaic_0001>

<llo_original>
// kernel: transformer_encoder.1
$region0: #{transformer_encoder.1}
  #allocation0 [shape = 'u32[]', space=smem, size = 0x4, offset = 0x4, fixed_abs, tag = 'smem constant byte address 0x4 - core index']
  #allocation1 [shape = 'u32[72,128]{1,0:T(1,128)}', space=vmem, size = 0x9000, scoped, tag = 'internal scratch']
  %s0 = inlined_call_operand.vmem [shape: f32[2,8,32], index: 0, kind: input, shape index: {}]
  %s1 = inlined_call_operand.vmem [shape: f32[8,32], index: 1, kind: input, shape index: {}]
  %s2 = inlined_call_operand.vmem [shape: f32[32,96], index: 2, kind: input, shape index: {}]
  %s3 = inlined_call_operand.vmem [shape: f32[1,96], index: 3, kind: input, shape index: {}]
  %s4 = inlined_call_operand.vmem [shape: f32[32,32], index: 4, kind: input, shape index: {}]
  %s5 = inlined_call_operand.vmem [shape: f32[32,64], index: 5, kind: input, shape index: {}]
  %s6 = inlined_call_operand.vmem [shape: f32[1,64], index: 6, kind: input, shape index: {}]
  %s7 = inlined_call_operand.vmem [shape: f32[64,32], index: 7, kind: input, shape index: {}]
  %s8 = inlined_call_operand.vmem [shape: f32[6,32], index: 8, kind: input, shape index: {}]
  %s9 = inlined_call_operand.hbm [shape: f32[2,8,32], index: 9, kind: output, shape index: {}]
  %s10 = sld [smem:[#allocation0]]
  $region46: #{transformer_encoder.1} parent=0
    _
  %s12 = ssub.s32 1, %s10
  %s13 = scalar_select 0, %s12, %s10
  $region1: #{transformer_encoder.1} parent=0
    #allocation2 [shape = 'u8[8192]{0}', space=vmem, size = 0x2000, scoped, tag = 'output window, operand 0, single buffered']
    #allocation3 [shape = 's32[1]{0}', space=sflag, size = 0x4, scoped, tag = 'scoped memory for transformer_encoder.1']
    %14 = vsyncpa [#allocation3], 0
    // Predicated region
    $region2: #{transformer_encoder.1} parent=1 // pred_check
      _
    $region3: #{transformer_encoder.1} parent=1 // pred_check_branch
      %16 = sbr.rel (0) target = $region5
    $region4: #{transformer_encoder.1} parent=1 // pred_region
      _
    $region5: #{transformer_encoder.1} parent=1 // pred_fallthru
      _
    // Predicated region
    $region6: #{transformer_encoder.1} parent=1 // pred_check
      _
    $region7: #{transformer_encoder.1} parent=1 // pred_check_branch
      %18 = sbr.rel (0) target = $region9
    $region8: #{transformer_encoder.1} parent=1 // pred_region
      _
    $region9: #{transformer_encoder.1} parent=1 // pred_fallthru
      _
    // Predicated region
    $region10: #{transformer_encoder.1} parent=1 // pred_check
      _
    $region11: #{transformer_encoder.1} parent=1 // pred_check_branch
      %20 = sbr.rel (0) target = $region13
    $region12: #{transformer_encoder.1} parent=1 // pred_region
      _
    $region13: #{transformer_encoder.1} parent=1 // pred_fallthru
      _
    // Predicated region
    $region14: #{transformer_encoder.1} parent=1 // pred_check
      _
    $region15: #{transformer_encoder.1} parent=1 // pred_check_branch
      %22 = sbr.rel (0) target = $region17
    $region16: #{transformer_encoder.1} parent=1 // pred_region
      _
    $region17: #{transformer_encoder.1} parent=1 // pred_fallthru
      _
    // Predicated region
    $region18: #{transformer_encoder.1} parent=1 // pred_check
      _
    $region19: #{transformer_encoder.1} parent=1 // pred_check_branch
      %24 = sbr.rel (0) target = $region21
    $region20: #{transformer_encoder.1} parent=1 // pred_region
      _
    $region21: #{transformer_encoder.1} parent=1 // pred_fallthru
      _
    // Predicated region
    $region22: #{transformer_encoder.1} parent=1 // pred_check
      _
    $region23: #{transformer_encoder.1} parent=1 // pred_check_branch
      %26 = sbr.rel (0) target = $region25
    $region24: #{transformer_encoder.1} parent=1 // pred_region
      _
    $region25: #{transformer_encoder.1} parent=1 // pred_fallthru
      _
    // Predicated region
    $region26: #{transformer_encoder.1} parent=1 // pred_check
      _
    $region27: #{transformer_encoder.1} parent=1 // pred_check_branch
      %28 = sbr.rel (0) target = $region29
    $region28: #{transformer_encoder.1} parent=1 // pred_region
      _
    $region29: #{transformer_encoder.1} parent=1 // pred_fallthru
      _
    // Predicated region
    $region30: #{transformer_encoder.1} parent=1 // pred_check
      _
    $region31: #{transformer_encoder.1} parent=1 // pred_check_branch
      %30 = sbr.rel (0) target = $region33
    $region32: #{transformer_encoder.1} parent=1 // pred_region
      _
    $region33: #{transformer_encoder.1} parent=1 // pred_fallthru
      _
    // Predicated region
    $region34: #{transformer_encoder.1} parent=1 // pred_check
      _
    $region35: #{transformer_encoder.1} parent=1 // pred_check_branch
      %32 = sbr.rel (0) target = $region37
    $region36: #{transformer_encoder.1} parent=1 // pred_region
      _
    $region37: #{transformer_encoder.1} parent=1 // pred_fallthru
      _
    %v33 = vld [vmem:[%s2] sm:$0xff]
    %v34 = vld [vmem:[%s2 + $0x8] sm:$0xff]
    %v35 = vld [vmem:[%s2 + $0x10] sm:$0xff]
    %v36 = vld [vmem:[%s2 + $0x18] sm:$0xff]
    %v37 = vld [vmem:[%s3] sm:$0x1]
    %v38 = vld [vmem:[%s4] sm:$0xff]
    %v39 = vld [vmem:[%s4 + $0x8] sm:$0xff]
    %v40 = vld [vmem:[%s4 + $0x10] sm:$0xff]
    %v41 = vld [vmem:[%s4 + $0x18] sm:$0xff]
    %v42 = vld [vmem:[%s5] sm:$0xff]
    %v43 = vld [vmem:[%s5 + $0x8] sm:$0xff]
    %v44 = vld [vmem:[%s5 + $0x10] sm:$0xff]
    %v45 = vld [vmem:[%s5 + $0x18] sm:$0xff]
    %v46 = vld [vmem:[%s6] sm:$0x1]
    %v47 = vld [vmem:[%s7] sm:$0xff]
    %v48 = vld [vmem:[%s7 + $0x8] sm:$0xff]
    %v49 = vld [vmem:[%s7 + $0x10] sm:$0xff]
    %v50 = vld [vmem:[%s7 + $0x18] sm:$0xff]
    %v51 = vld [vmem:[%s7 + $0x20] sm:$0xff]
    %v52 = vld [vmem:[%s7 + $0x28] sm:$0xff]
    %v53 = vld [vmem:[%s7 + $0x30] sm:$0xff]
    %v54 = vld [vmem:[%s7 + $0x38] sm:$0xff]
    %v55 = vld [vmem:[%s8] sm:$0x3f]
    %v56 = vld [vmem:[%s0] sm:$0xff]
    %v57 = vld [vmem:[%s0 + $0x8] sm:$0xff]
    %v58 = vld [vmem:[%s1] sm:$0xff]
    %v59 = vadd.f32 %v56, %v58
    %v60 = vadd.f32 %v57, %v58
    %v62 = vperm.slane %v37, 0
    %vm64 = vcmask 261120
    %v66 = vsel %vm64, %v59, 0
    %v69 = vsel %vm64, %v60, 0
    %71 = vmatpush.msra.mxu0 0.0
    %72 = vmatpush.msra.mxu0 0.0
    %73 = vmatpush.msra.mxu0 0.0
    %74 = vmatpush.msra.mxu0 0.0
    %75 = vmatpush.msra.mxu0 0.0
    %76 = vmatpush.msra.mxu0 0.0
    %77 = vmatpush.msra.mxu0 0.0
    %78 = vmatpush.msra.mxu0 0.0
    %79 = vmatpush.msra.mxu0 0.0
    %80 = vmatpush.msra.mxu0 0.0
    %81 = vmatpush.msra.mxu0 0.0
    %82 = vmatpush.msra.mxu0 0.0
    %83 = vmatpush.msra.mxu0 %v36
    %84 = vmatpush.msra.mxu0 %v35
    %85 = vmatpush.msra.mxu0 %v34
    %86 = vmatpush.msra.mxu0 %v33
    %87 = vmatmul.f32.gmra.mxu0 %v66
    %v88 = vpop.f32.mrf.mxu0
    %v89 = vadd.f32 %v62, %v88
    %90 = vmatmul.f32.gmra.mxu0 %v69
    %v91 = vpop.f32.mrf.mxu0
    %v92 = vadd.f32 %v62, %v91
    %93 = vdwg.mxu0
    %95 = vrot.lane.b32.xlu0 %v89, 96
    %v96 = vpop.permute.xlu0 %95
    %vm97 = vcmask 64512
    %v98 = vsel %vm97, %v89, 0
    %v100 = vsel %vm97, %v96, 0
    %102 = vmatpush.xpose.msra.mxu0 0.0
    %103 = vmatpush.xpose.msra.mxu0 0.0
    %104 = vmatpush.xpose.msra.mxu0 0.0
    %105 = vmatpush.xpose.msra.mxu0 0.0
    %106 = vmatpush.xpose.msra.mxu0 0.0
    %107 = vmatpush.xpose.msra.mxu0 0.0
    %108 = vmatpush.xpose.msra.mxu0 0.0
    %109 = vmatpush.xpose.msra.mxu0 0.0
    %110 = vmatpush.xpose.msra.mxu0 0.0
    %111 = vmatpush.xpose.msra.mxu0 0.0
    %112 = vmatpush.xpose.msra.mxu0 0.0
    %113 = vmatpush.xpose.msra.mxu0 0.0
    %114 = vmatpush.xpose.msra.mxu0 0.0
    %115 = vmatpush.xpose.msra.mxu0 0.0
    %116 = vmatpush.xpose.msra.mxu0 0.0
    %117 = vmatpush.xpose.msra.mxu0 %v100
    %118 = vmatmul.f32.gmra.mxu0 %v98
    %v119 = vpop.f32.mrf.mxu0
    %v120 = vadd.f32 0.0, %v119
    %121 = vdwg.mxu0
    %123 = vrot.lane.b32.xlu0 %v92, 96
    %v124 = vpop.permute.xlu0 %123
    %v125 = vsel %vm97, %v92, 0
    %v127 = vsel %vm97, %v124, 0
    %129 = vmatpush.xpose.msra.mxu0 0.0
    %130 = vmatpush.xpose.msra.mxu0 0.0
    %131 = vmatpush.xpose.msra.mxu0 0.0
    %132 = vmatpush.xpose.msra.mxu0 0.0
    %133 = vmatpush.xpose.msra.mxu0 0.0
    %134 = vmatpush.xpose.msra.mxu0 0.0
    %135 = vmatpush.xpose.msra.mxu0 0.0
    %136 = vmatpush.xpose.msra.mxu0 0.0
    %137 = vmatpush.xpose.msra.mxu0 0.0
    %138 = vmatpush.xpose.msra.mxu0 0.0
    %139 = vmatpush.xpose.msra.mxu0 0.0
    %140 = vmatpush.xpose.msra.mxu0 0.0
    %141 = vmatpush.xpose.msra.mxu0 0.0
    %142 = vmatpush.xpose.msra.mxu0 0.0
    %143 = vmatpush.xpose.msra.mxu0 0.0
    %144 = vmatpush.xpose.msra.mxu0 %v127
    %145 = vmatmul.f32.gmra.mxu0 %v125
    %v146 = vpop.f32.mrf.mxu0
    %v147 = vadd.f32 0.0, %v146
    %148 = vdwg.mxu0
    %v149 = vmul.f32 %v120, 0.35355338
    %v150 = vmul.f32 %v147, 0.35355338
    %151 = vrot.lane.b32.xlu0 %v89, 64
    %v152 = vpop.permute.xlu0 %151
    %v155 = vsel %vm97, %v149, 0
    %157 = vmatpush.msra.mxu0 0.0
    %158 = vmatpush.msra.mxu0 0.0
    %159 = vmatpush.msra.mxu0 0.0
    %160 = vmatpush.msra.mxu0 0.0
    %161 = vmatpush.msra.mxu0 0.0
    %162 = vmatpush.msra.mxu0 0.0
    %163 = vmatpush.msra.mxu0 0.0
    %164 = vmatpush.msra.mxu0 0.0
    %165 = vmatpush.msra.mxu0 0.0
    %166 = vmatpush.msra.mxu0 0.0
    %167 = vmatpush.msra.mxu0 0.0
    %168 = vmatpush.msra.mxu0 0.0
    %169 = vmatpush.msra.mxu0 0.0
    %170 = vmatpush.msra.mxu0 0.0
    %171 = vmatpush.msra.mxu0 0.0
    %172 = vmatpush.msra.mxu0 %v152
    %173 = vmatmul.f32.gmra.mxu0 %v155
    %v174 = vpop.f32.mrf.mxu0
    %v175 = vadd.f32 0.0, %v174
    %176 = vdwg.mxu0
    %177 = vrot.lane.b32.xlu0 %v92, 64
    %v178 = vpop.permute.xlu0 %177
    %v181 = vsel %vm97, %v150, 0
    %183 = vmatpush.msra.mxu0 0.0
    %184 = vmatpush.msra.mxu0 0.0
    %185 = vmatpush.msra.mxu0 0.0
    %186 = vmatpush.msra.mxu0 0.0
    %187 = vmatpush.msra.mxu0 0.0
    %188 = vmatpush.msra.mxu0 0.0
    %189 = vmatpush.msra.mxu0 0.0
    %190 = vmatpush.msra.mxu0 0.0
    %191 = vmatpush.msra.mxu0 0.0
    %192 = vmatpush.msra.mxu0 0.0
    %193 = vmatpush.msra.mxu0 0.0
    %194 = vmatpush.msra.mxu0 0.0
    %195 = vmatpush.msra.mxu0 0.0
    %196 = vmatpush.msra.mxu0 0.0
    %197 = vmatpush.msra.mxu0 0.0
    %198 = vmatpush.msra.mxu0 %v178
    %199 = vmatmul.f32.gmra.mxu0 %v181
    %v200 = vpop.f32.mrf.mxu0
    %v201 = vadd.f32 0.0, %v200
    %202 = vdwg.mxu0
    %v203 = vsel %vm97, %v175, -inf
    %204 = vmax.xlane.f32.xlu0 %v203
    %v205 = vpop.xlane.xlu0 %204
    %v206 = vsel %vm97, %v201, -inf
    %207 = vmax.xlane.f32.xlu0 %v206
    %v208 = vpop.xlane.xlu0 %207
    %v209 = vsub.f32 %v175, %v205
    %v210 = vsub.f32 %v201, %v208
    %v211 = vmul.f32 %v209, 1.442695
    %v212 = vpow.pop %v211
    %v213 = vmul.f32 %v210, 1.442695
    %v214 = vpow.pop %v213
    %v215 = vsel %vm97, %v212, 0.0
    %216 = vadd.xlane.f32.xlu0 %v215
    %v217 = vpop.xlane.xlu0 %216
    %v218 = vsel %vm97, %v214, 0.0
    %219 = vadd.xlane.f32.xlu0 %v218
    %v220 = vpop.xlane.xlu0 %219
    %v221 = vrcp.pop %v217
    %v222 = vrcp.pop %v220
    %v223 = vmul.f32 %v212, %v221
    %v224 = vmul.f32 %v214, %v222
    %225 = vrot.lane.b32.xlu0 %v89, 120
    %v226 = vpop.permute.xlu0 %225
    %227 = vrot.lane.b32.xlu0 %v89, 88
    %v228 = vpop.permute.xlu0 %227
    %v229 = vsel %vm97, %v226, 0
    %v231 = vsel %vm97, %v228, 0
    %233 = vmatpush.xpose.msra.mxu0 0.0
    %234 = vmatpush.xpose.msra.mxu0 0.0
    %235 = vmatpush.xpose.msra.mxu0 0.0
    %236 = vmatpush.xpose.msra.mxu0 0.0
    %237 = vmatpush.xpose.msra.mxu0 0.0
    %238 = vmatpush.xpose.msra.mxu0 0.0
    %239 = vmatpush.xpose.msra.mxu0 0.0
    %240 = vmatpush.xpose.msra.mxu0 0.0
    %241 = vmatpush.xpose.msra.mxu0 0.0
    %242 = vmatpush.xpose.msra.mxu0 0.0
    %243 = vmatpush.xpose.msra.mxu0 0.0
    %244 = vmatpush.xpose.msra.mxu0 0.0
    %245 = vmatpush.xpose.msra.mxu0 0.0
    %246 = vmatpush.xpose.msra.mxu0 0.0
    %247 = vmatpush.xpose.msra.mxu0 0.0
    %248 = vmatpush.xpose.msra.mxu0 %v231
    %249 = vmatmul.f32.gmra.mxu0 %v229
    %v250 = vpop.f32.mrf.mxu0
    %v251 = vadd.f32 0.0, %v250
    %252 = vdwg.mxu0
    %253 = vrot.lane.b32.xlu0 %v92, 120
    %v254 = vpop.permute.xlu0 %253
    %255 = vrot.lane.b32.xlu0 %v92, 88
    %v256 = vpop.permute.xlu0 %255
    %v257 = vsel %vm97, %v254, 0
    %v259 = vsel %vm97, %v256, 0
    %261 = vmatpush.xpose.msra.mxu0 0.0
    %262 = vmatpush.xpose.msra.mxu0 0.0
    %263 = vmatpush.xpose.msra.mxu0 0.0
    %264 = vmatpush.xpose.msra.mxu0 0.0
    %265 = vmatpush.xpose.msra.mxu0 0.0
    %266 = vmatpush.xpose.msra.mxu0 0.0
    %267 = vmatpush.xpose.msra.mxu0 0.0
    %268 = vmatpush.xpose.msra.mxu0 0.0
    %269 = vmatpush.xpose.msra.mxu0 0.0
    %270 = vmatpush.xpose.msra.mxu0 0.0
    %271 = vmatpush.xpose.msra.mxu0 0.0
    %272 = vmatpush.xpose.msra.mxu0 0.0
    %273 = vmatpush.xpose.msra.mxu0 0.0
    %274 = vmatpush.xpose.msra.mxu0 0.0
    %275 = vmatpush.xpose.msra.mxu0 0.0
    %276 = vmatpush.xpose.msra.mxu0 %v259
    %277 = vmatmul.f32.gmra.mxu0 %v257
    %v278 = vpop.f32.mrf.mxu0
    %v279 = vadd.f32 0.0, %v278
    %280 = vdwg.mxu0
    %v281 = vmul.f32 %v251, 0.35355338
    %v282 = vmul.f32 %v279, 0.35355338
    %283 = vrot.lane.b32.xlu0 %v89, 56
    %v284 = vpop.permute.xlu0 %283
    %v287 = vsel %vm97, %v281, 0
    %289 = vmatpush.msra.mxu0 0.0
    %290 = vmatpush.msra.mxu0 0.0
    %291 = vmatpush.msra.mxu0 0.0
    %292 = vmatpush.msra.mxu0 0.0
    %293 = vmatpush.msra.mxu0 0.0
    %294 = vmatpush.msra.mxu0 0.0
    %295 = vmatpush.msra.mxu0 0.0
    %296 = vmatpush.msra.mxu0 0.0
    %297 = vmatpush.msra.mxu0 0.0
    %298 = vmatpush.msra.mxu0 0.0
    %299 = vmatpush.msra.mxu0 0.0
    %300 = vmatpush.msra.mxu0 0.0
    %301 = vmatpush.msra.mxu0 0.0
    %302 = vmatpush.msra.mxu0 0.0
    %303 = vmatpush.msra.mxu0 0.0
    %304 = vmatpush.msra.mxu0 %v284
    %305 = vmatmul.f32.gmra.mxu0 %v287
    %v306 = vpop.f32.mrf.mxu0
    %v307 = vadd.f32 0.0, %v306
    %308 = vdwg.mxu0
    %309 = vrot.lane.b32.xlu0 %v92, 56
    %v310 = vpop.permute.xlu0 %309
    %v313 = vsel %vm97, %v282, 0
    %315 = vmatpush.msra.mxu0 0.0
    %316 = vmatpush.msra.mxu0 0.0
    %317 = vmatpush.msra.mxu0 0.0
    %318 = vmatpush.msra.mxu0 0.0
    %319 = vmatpush.msra.mxu0 0.0
    %320 = vmatpush.msra.mxu0 0.0
    %321 = vmatpush.msra.mxu0 0.0
    %322 = vmatpush.msra.mxu0 0.0
    %323 = vmatpush.msra.mxu0 0.0
    %324 = vmatpush.msra.mxu0 0.0
    %325 = vmatpush.msra.mxu0 0.0
    %326 = vmatpush.msra.mxu0 0.0
    %327 = vmatpush.msra.mxu0 0.0
    %328 = vmatpush.msra.mxu0 0.0
    %329 = vmatpush.msra.mxu0 0.0
    %330 = vmatpush.msra.mxu0 %v310
    %331 = vmatmul.f32.gmra.mxu0 %v313
    %v332 = vpop.f32.mrf.mxu0
    %v333 = vadd.f32 0.0, %v332
    %334 = vdwg.mxu0
    %v335 = vsel %vm97, %v307, -inf
    %336 = vmax.xlane.f32.xlu0 %v335
    %v337 = vpop.xlane.xlu0 %336
    %v338 = vsel %vm97, %v333, -inf
    %339 = vmax.xlane.f32.xlu0 %v338
    %v340 = vpop.xlane.xlu0 %339
    %v341 = vsub.f32 %v307, %v337
    %v342 = vsub.f32 %v333, %v340
    %v343 = vmul.f32 %v341, 1.442695
    %v344 = vpow.pop %v343
    %v345 = vmul.f32 %v342, 1.442695
    %v346 = vpow.pop %v345
    %v347 = vsel %vm97, %v344, 0.0
    %348 = vadd.xlane.f32.xlu0 %v347
    %v349 = vpop.xlane.xlu0 %348
    %v350 = vsel %vm97, %v346, 0.0
    %351 = vadd.xlane.f32.xlu0 %v350
    %v352 = vpop.xlane.xlu0 %351
    %v353 = vrcp.pop %v349
    %v354 = vrcp.pop %v352
    %v355 = vmul.f32 %v344, %v353
    %v356 = vmul.f32 %v346, %v354
    %357 = vrot.lane.b32.xlu0 %v89, 112
    %v358 = vpop.permute.xlu0 %357
    %359 = vrot.lane.b32.xlu0 %v89, 80
    %v360 = vpop.permute.xlu0 %359
    %v361 = vsel %vm97, %v358, 0
    %v363 = vsel %vm97, %v360, 0
    %365 = vmatpush.xpose.msra.mxu0 0.0
    %366 = vmatpush.xpose.msra.mxu0 0.0
    %367 = vmatpush.xpose.msra.mxu0 0.0
    %368 = vmatpush.xpose.msra.mxu0 0.0
    %369 = vmatpush.xpose.msra.mxu0 0.0
    %370 = vmatpush.xpose.msra.mxu0 0.0
    %371 = vmatpush.xpose.msra.mxu0 0.0
    %372 = vmatpush.xpose.msra.mxu0 0.0
    %373 = vmatpush.xpose.msra.mxu0 0.0
    %374 = vmatpush.xpose.msra.mxu0 0.0
    %375 = vmatpush.xpose.msra.mxu0 0.0
    %376 = vmatpush.xpose.msra.mxu0 0.0
    %377 = vmatpush.xpose.msra.mxu0 0.0
    %378 = vmatpush.xpose.msra.mxu0 0.0
    %379 = vmatpush.xpose.msra.mxu0 0.0
    %380 = vmatpush.xpose.msra.mxu0 %v363
    %381 = vmatmul.f32.gmra.mxu0 %v361
    %v382 = vpop.f32.mrf.mxu0
    %v383 = vadd.f32 0.0, %v382
    %384 = vdwg.mxu0
    %385 = vrot.lane.b32.xlu0 %v92, 112
    %v386 = vpop.permute.xlu0 %385
    %387 = vrot.lane.b32.xlu0 %v92, 80
    %v388 = vpop.permute.xlu0 %387
    %v389 = vsel %vm97, %v386, 0
    %v391 = vsel %vm97, %v388, 0
    %393 = vmatpush.xpose.msra.mxu0 0.0
    %394 = vmatpush.xpose.msra.mxu0 0.0
    %395 = vmatpush.xpose.msra.mxu0 0.0
    %396 = vmatpush.xpose.msra.mxu0 0.0
    %397 = vmatpush.xpose.msra.mxu0 0.0
    %398 = vmatpush.xpose.msra.mxu0 0.0
    %399 = vmatpush.xpose.msra.mxu0 0.0
    %400 = vmatpush.xpose.msra.mxu0 0.0
    %401 = vmatpush.xpose.msra.mxu0 0.0
    %402 = vmatpush.xpose.msra.mxu0 0.0
    %403 = vmatpush.xpose.msra.mxu0 0.0
    %404 = vmatpush.xpose.msra.mxu0 0.0
    %405 = vmatpush.xpose.msra.mxu0 0.0
    %406 = vmatpush.xpose.msra.mxu0 0.0
    %407 = vmatpush.xpose.msra.mxu0 0.0
    %408 = vmatpush.xpose.msra.mxu0 %v391
    %409 = vmatmul.f32.gmra.mxu0 %v389
    %v410 = vpop.f32.mrf.mxu0
    %v411 = vadd.f32 0.0, %v410
    %412 = vdwg.mxu0
    %v413 = vmul.f32 %v383, 0.35355338
    %v414 = vmul.f32 %v411, 0.35355338
    %415 = vrot.lane.b32.xlu0 %v89, 48
    %v416 = vpop.permute.xlu0 %415
    %v419 = vsel %vm97, %v413, 0
    %421 = vmatpush.msra.mxu0 0.0
    %422 = vmatpush.msra.mxu0 0.0
    %423 = vmatpush.msra.mxu0 0.0
    %424 = vmatpush.msra.mxu0 0.0
    %425 = vmatpush.msra.mxu0 0.0
    %426 = vmatpush.msra.mxu0 0.0
    %427 = vmatpush.msra.mxu0 0.0
    %428 = vmatpush.msra.mxu0 0.0
    %429 = vmatpush.msra.mxu0 0.0
    %430 = vmatpush.msra.mxu0 0.0
    %431 = vmatpush.msra.mxu0 0.0
    %432 = vmatpush.msra.mxu0 0.0
    %433 = vmatpush.msra.mxu0 0.0
    %434 = vmatpush.msra.mxu0 0.0
    %435 = vmatpush.msra.mxu0 0.0
    %436 = vmatpush.msra.mxu0 %v416
    %437 = vmatmul.f32.gmra.mxu0 %v419
    %v438 = vpop.f32.mrf.mxu0
    %v439 = vadd.f32 0.0, %v438
    %440 = vdwg.mxu0
    %441 = vrot.lane.b32.xlu0 %v92, 48
    %v442 = vpop.permute.xlu0 %441
    %v445 = vsel %vm97, %v414, 0
    %447 = vmatpush.msra.mxu0 0.0
    %448 = vmatpush.msra.mxu0 0.0
    %449 = vmatpush.msra.mxu0 0.0
    %450 = vmatpush.msra.mxu0 0.0
    %451 = vmatpush.msra.mxu0 0.0
    %452 = vmatpush.msra.mxu0 0.0
    %453 = vmatpush.msra.mxu0 0.0
    %454 = vmatpush.msra.mxu0 0.0
    %455 = vmatpush.msra.mxu0 0.0
    %456 = vmatpush.msra.mxu0 0.0
    %457 = vmatpush.msra.mxu0 0.0
    %458 = vmatpush.msra.mxu0 0.0
    %459 = vmatpush.msra.mxu0 0.0
    %460 = vmatpush.msra.mxu0 0.0
    %461 = vmatpush.msra.mxu0 0.0
    %462 = vmatpush.msra.mxu0 %v442
    %463 = vmatmul.f32.gmra.mxu0 %v445
    %v464 = vpop.f32.mrf.mxu0
    %v465 = vadd.f32 0.0, %v464
    %466 = vdwg.mxu0
    %v467 = vsel %vm97, %v439, -inf
    %468 = vmax.xlane.f32.xlu0 %v467
    %v469 = vpop.xlane.xlu0 %468
    %v470 = vsel %vm97, %v465, -inf
    %471 = vmax.xlane.f32.xlu0 %v470
    %v472 = vpop.xlane.xlu0 %471
    %v473 = vsub.f32 %v439, %v469
    %v474 = vsub.f32 %v465, %v472
    %v475 = vmul.f32 %v473, 1.442695
    %v476 = vpow.pop %v475
    %v477 = vmul.f32 %v474, 1.442695
    %v478 = vpow.pop %v477
    %v479 = vsel %vm97, %v476, 0.0
    %480 = vadd.xlane.f32.xlu0 %v479
    %v481 = vpop.xlane.xlu0 %480
    %v482 = vsel %vm97, %v478, 0.0
    %483 = vadd.xlane.f32.xlu0 %v482
    %v484 = vpop.xlane.xlu0 %483
    %v485 = vrcp.pop %v481
    %v486 = vrcp.pop %v484
    %v487 = vmul.f32 %v476, %v485
    %v488 = vmul.f32 %v478, %v486
    %489 = vrot.lane.b32.xlu0 %v89, 104
    %v490 = vpop.permute.xlu0 %489
    %491 = vrot.lane.b32.xlu0 %v89, 72
    %v492 = vpop.permute.xlu0 %491
    %v493 = vsel %vm97, %v490, 0
    %v495 = vsel %vm97, %v492, 0
    %497 = vmatpush.xpose.msra.mxu0 0.0
    %498 = vmatpush.xpose.msra.mxu0 0.0
    %499 = vmatpush.xpose.msra.mxu0 0.0
    %500 = vmatpush.xpose.msra.mxu0 0.0
    %501 = vmatpush.xpose.msra.mxu0 0.0
    %502 = vmatpush.xpose.msra.mxu0 0.0
    %503 = vmatpush.xpose.msra.mxu0 0.0
    %504 = vmatpush.xpose.msra.mxu0 0.0
    %505 = vmatpush.xpose.msra.mxu0 0.0
    %506 = vmatpush.xpose.msra.mxu0 0.0
    %507 = vmatpush.xpose.msra.mxu0 0.0
    %508 = vmatpush.xpose.msra.mxu0 0.0
    %509 = vmatpush.xpose.msra.mxu0 0.0
    %510 = vmatpush.xpose.msra.mxu0 0.0
    %511 = vmatpush.xpose.msra.mxu0 0.0
    %512 = vmatpush.xpose.msra.mxu0 %v495
    %513 = vmatmul.f32.gmra.mxu0 %v493
    %v514 = vpop.f32.mrf.mxu0
    %v515 = vadd.f32 0.0, %v514
    %516 = vdwg.mxu0
    %517 = vrot.lane.b32.xlu0 %v92, 104
    %v518 = vpop.permute.xlu0 %517
    %519 = vrot.lane.b32.xlu0 %v92, 72
    %v520 = vpop.permute.xlu0 %519
    %v521 = vsel %vm97, %v518, 0
    %v523 = vsel %vm97, %v520, 0
    %525 = vmatpush.xpose.msra.mxu0 0.0
    %526 = vmatpush.xpose.msra.mxu0 0.0
    %527 = vmatpush.xpose.msra.mxu0 0.0
    %528 = vmatpush.xpose.msra.mxu0 0.0
    %529 = vmatpush.xpose.msra.mxu0 0.0
    %530 = vmatpush.xpose.msra.mxu0 0.0
    %531 = vmatpush.xpose.msra.mxu0 0.0
    %532 = vmatpush.xpose.msra.mxu0 0.0
    %533 = vmatpush.xpose.msra.mxu0 0.0
    %534 = vmatpush.xpose.msra.mxu0 0.0
    %535 = vmatpush.xpose.msra.mxu0 0.0
    %536 = vmatpush.xpose.msra.mxu0 0.0
    %537 = vmatpush.xpose.msra.mxu0 0.0
    %538 = vmatpush.xpose.msra.mxu0 0.0
    %539 = vmatpush.xpose.msra.mxu0 0.0
    %540 = vmatpush.xpose.msra.mxu0 %v523
    %541 = vmatmul.f32.gmra.mxu0 %v521
    %v542 = vpop.f32.mrf.mxu0
    %v543 = vadd.f32 0.0, %v542
    %544 = vdwg.mxu0
    %v545 = vmul.f32 %v515, 0.35355338
    %v546 = vmul.f32 %v543, 0.35355338
    %547 = vrot.lane.b32.xlu0 %v89, 40
    %v548 = vpop.permute.xlu0 %547
    %v551 = vsel %vm97, %v545, 0
    %553 = vmatpush.msra.mxu0 0.0
    %554 = vmatpush.msra.mxu0 0.0
    %555 = vmatpush.msra.mxu0 0.0
    %556 = vmatpush.msra.mxu0 0.0
    %557 = vmatpush.msra.mxu0 0.0
    %558 = vmatpush.msra.mxu0 0.0
    %559 = vmatpush.msra.mxu0 0.0
    %560 = vmatpush.msra.mxu0 0.0
    %561 = vmatpush.msra.mxu0 0.0
    %562 = vmatpush.msra.mxu0 0.0
    %563 = vmatpush.msra.mxu0 0.0
    %564 = vmatpush.msra.mxu0 0.0
    %565 = vmatpush.msra.mxu0 0.0
    %566 = vmatpush.msra.mxu0 0.0
    %567 = vmatpush.msra.mxu0 0.0
    %568 = vmatpush.msra.mxu0 %v548
    %569 = vmatmul.f32.gmra.mxu0 %v551
    %v570 = vpop.f32.mrf.mxu0
    %v571 = vadd.f32 0.0, %v570
    %572 = vdwg.mxu0
    %573 = vrot.lane.b32.xlu0 %v92, 40
    %v574 = vpop.permute.xlu0 %573
    %v577 = vsel %vm97, %v546, 0
    %579 = vmatpush.msra.mxu0 0.0
    %580 = vmatpush.msra.mxu0 0.0
    %581 = vmatpush.msra.mxu0 0.0
    %582 = vmatpush.msra.mxu0 0.0
    %583 = vmatpush.msra.mxu0 0.0
    %584 = vmatpush.msra.mxu0 0.0
    %585 = vmatpush.msra.mxu0 0.0
    %586 = vmatpush.msra.mxu0 0.0
    %587 = vmatpush.msra.mxu0 0.0
    %588 = vmatpush.msra.mxu0 0.0
    %589 = vmatpush.msra.mxu0 0.0
    %590 = vmatpush.msra.mxu0 0.0
    %591 = vmatpush.msra.mxu0 0.0
    %592 = vmatpush.msra.mxu0 0.0
    %593 = vmatpush.msra.mxu0 0.0
    %594 = vmatpush.msra.mxu0 %v574
    %595 = vmatmul.f32.gmra.mxu0 %v577
    %v596 = vpop.f32.mrf.mxu0
    %v597 = vadd.f32 0.0, %v596
    %598 = vdwg.mxu0
    %v599 = vsel %vm97, %v571, -inf
    %600 = vmax.xlane.f32.xlu0 %v599
    %v601 = vpop.xlane.xlu0 %600
    %v602 = vsel %vm97, %v597, -inf
    %603 = vmax.xlane.f32.xlu0 %v602
    %v604 = vpop.xlane.xlu0 %603
    %v605 = vsub.f32 %v571, %v601
    %v606 = vsub.f32 %v597, %v604
    %v607 = vmul.f32 %v605, 1.442695
    %v608 = vpow.pop %v607
    %v609 = vmul.f32 %v606, 1.442695
    %v610 = vpow.pop %v609
    %v611 = vsel %vm97, %v608, 0.0
    %612 = vadd.xlane.f32.xlu0 %v611
    %v613 = vpop.xlane.xlu0 %612
    %v614 = vsel %vm97, %v610, 0.0
    %615 = vadd.xlane.f32.xlu0 %v614
    %v616 = vpop.xlane.xlu0 %615
    %v617 = vrcp.pop %v613
    %v618 = vrcp.pop %v616
    %v619 = vmul.f32 %v608, %v617
    %v620 = vmul.f32 %v610, %v618
    %623 = vrot.lane.b32.xlu0 %v355, 8
    %v624 = vpop.permute.xlu0 %623
    %625 = vrot.lane.b32.xlu0 %v356, 8
    %v626 = vpop.permute.xlu0 %625
    %631 = vrot.lane.b32.xlu0 %v487, 16
    %v632 = vpop.permute.xlu0 %631
    %633 = vrot.lane.b32.xlu0 %v488, 16
    %v634 = vpop.permute.xlu0 %633
    %639 = vrot.lane.b32.xlu0 %v619, 24
    %v640 = vpop.permute.xlu0 %639
    %641 = vrot.lane.b32.xlu0 %v620, 24
    %v642 = vpop.permute.xlu0 %641
    %v645 = vsel %vm97, %v223, %v624
    %v646 = vsel %vm97, %v224, %v626
    %vm647 = vcmask 130048
    %v648 = vsel %vm647, %v645, %v632
    %v649 = vsel %vm647, %v646, %v634
    %vm650 = vcmask 195584
    %v651 = vsel %vm650, %v648, %v640
    %v652 = vsel %vm650, %v649, %v642
    %v653 = vperm.slane %v55, 0
    %v655 = vsel %vm64, %v651, 0
    %v658 = vsel %vm64, %v652, 0
    %660 = vmatpush.msra.mxu0 0.0
    %661 = vmatpush.msra.mxu0 0.0
    %662 = vmatpush.msra.mxu0 0.0
    %663 = vmatpush.msra.mxu0 0.0
    %664 = vmatpush.msra.mxu0 0.0
    %665 = vmatpush.msra.mxu0 0.0
    %666 = vmatpush.msra.mxu0 0.0
    %667 = vmatpush.msra.mxu0 0.0
    %668 = vmatpush.msra.mxu0 0.0
    %669 = vmatpush.msra.mxu0 0.0
    %670 = vmatpush.msra.mxu0 0.0
    %671 = vmatpush.msra.mxu0 0.0
    %672 = vmatpush.msra.mxu0 %v41
    %673 = vmatpush.msra.mxu0 %v40
    %674 = vmatpush.msra.mxu0 %v39
    %675 = vmatpush.msra.mxu0 %v38
    %676 = vmatmul.f32.gmra.mxu0 %v655
    %v677 = vpop.f32.mrf.mxu0
    %v678 = vadd.f32 %v653, %v677
    %679 = vmatmul.f32.gmra.mxu0 %v658
    %v680 = vpop.f32.mrf.mxu0
    %v681 = vadd.f32 %v653, %v680
    %682 = vdwg.mxu0
    %v683 = vsel %vm64, %v678, 0.0
    %684 = vadd.xlane.f32.xlu0 %v683
    %v685 = vpop.xlane.xlu0 %684
    %v686 = vsel %vm64, %v681, 0.0
    %687 = vadd.xlane.f32.xlu0 %v686
    %v688 = vpop.xlane.xlu0 %687
    %v689 = vrcp.pop 32.0
    %v690 = vmul.f32 32.0, %v689
    %v691 = vsub.f32 1.0, %v690
    %v692 = vmul.f32 %v689, %v691
    %v693 = vadd.f32 %v689, %v692
    %vm694 = vweird.f32 %v689
    %v695 = vsel %vm694, %v689, %v693
    %v696 = vmul.f32 %v685, %v695
    %v697 = vmul.f32 %v688, %v695
    %v698 = vsub.f32 %v678, %v696
    %v699 = vsub.f32 %v681, %v697
    %v700 = vmul.f32 %v698, %v698
    %v701 = vmul.f32 %v699, %v699
    %v702 = vsel %vm64, %v700, 0.0
    %703 = vadd.xlane.f32.xlu0 %v702
    %v704 = vpop.xlane.xlu0 %703
    %v705 = vsel %vm64, %v701, 0.0
    %706 = vadd.xlane.f32.xlu0 %v705
    %v707 = vpop.xlane.xlu0 %706
    %v708 = vmul.f32 %v704, %v695
    %v709 = vmul.f32 %v707, %v695
    %v710 = vadd.f32 %v708, 1e-05
    %v711 = vadd.f32 %v709, 1e-05
    %v712 = vrsqrt.pop %v710
    %v713 = vmul.f32 %v712, %v710
    %v714 = vmul.f32 %v713, %v712
    %v715 = vmul.f32 0.5, %v714
    %v716 = vsub.f32 1.5, %v715
    %v717 = vmul.f32 %v712, %v716
    %vm718 = vweird.f32 %v710
    %vm719 = vweird.f32 %v712
    %vm720 = vmor %vm718, %vm719
    %v721 = vsel %vm720, %v712, %v717
    %v722 = vrsqrt.pop %v711
    %v723 = vmul.f32 %v722, %v711
    %v724 = vmul.f32 %v723, %v722
    %v725 = vmul.f32 0.5, %v724
    %v726 = vsub.f32 1.5, %v725
    %v727 = vmul.f32 %v722, %v726
    %vm728 = vweird.f32 %v711
    %vm729 = vweird.f32 %v722
    %vm730 = vmor %vm728, %vm729
    %v731 = vsel %vm730, %v722, %v727
    %v732 = vmul.f32 %v698, %v721
    %v733 = vmul.f32 %v699, %v731
    %v734 = vperm.slane %v55, 1
    %v735 = vmul.f32 %v732, %v734
    %v736 = vmul.f32 %v733, %v734
    %v737 = vperm.slane %v55, 2
    %v738 = vadd.f32 %v735, %v737
    %v739 = vadd.f32 %v736, %v737
    %v740 = vadd.f32 %v678, %v738
    %v741 = vadd.f32 %v681, %v739
    %v742 = vadd.f32 %v678, %v740
    %v743 = vadd.f32 %v681, %v741
    %v745 = vperm.slane %v46, 0
    %v748 = vsel %vm64, %v742, 0
    %v751 = vsel %vm64, %v743, 0
    %753 = vmatpush.msra.mxu0 0.0
    %754 = vmatpush.msra.mxu0 0.0
    %755 = vmatpush.msra.mxu0 0.0
    %756 = vmatpush.msra.mxu0 0.0
    %757 = vmatpush.msra.mxu0 0.0
    %758 = vmatpush.msra.mxu0 0.0
    %759 = vmatpush.msra.mxu0 0.0
    %760 = vmatpush.msra.mxu0 0.0
    %761 = vmatpush.msra.mxu0 0.0
    %762 = vmatpush.msra.mxu0 0.0
    %763 = vmatpush.msra.mxu0 0.0
    %764 = vmatpush.msra.mxu0 0.0
    %765 = vmatpush.msra.mxu0 %v45
    %766 = vmatpush.msra.mxu0 %v44
    %767 = vmatpush.msra.mxu0 %v43
    %768 = vmatpush.msra.mxu0 %v42
    %769 = vmatmul.f32.gmra.mxu0 %v748
    %v770 = vpop.f32.mrf.mxu0
    %v771 = vadd.f32 %v745, %v770
    %772 = vmatmul.f32.gmra.mxu0 %v751
    %v773 = vpop.f32.mrf.mxu0
    %v774 = vadd.f32 %v745, %v773
    %775 = vdwg.mxu0
    %v776 = vmax.f32 %v771, 0.0
    %v777 = vmax.f32 %v774, 0.0
    %v778 = vperm.slane %v55, 5
    %vm779 = vcmask 523264
    %v781 = vsel %vm779, %v776, 0
    %v784 = vsel %vm779, %v777, 0
    %786 = vmatpush.msra.mxu0 0.0
    %787 = vmatpush.msra.mxu0 0.0
    %788 = vmatpush.msra.mxu0 0.0
    %789 = vmatpush.msra.mxu0 0.0
    %790 = vmatpush.msra.mxu0 0.0
    %791 = vmatpush.msra.mxu0 0.0
    %792 = vmatpush.msra.mxu0 0.0
    %793 = vmatpush.msra.mxu0 0.0
    %794 = vmatpush.msra.mxu0 %v54
    %795 = vmatpush.msra.mxu0 %v53
    %796 = vmatpush.msra.mxu0 %v52
    %797 = vmatpush.msra.mxu0 %v51
    %798 = vmatpush.msra.mxu0 %v50
    %799 = vmatpush.msra.mxu0 %v49
    %800 = vmatpush.msra.mxu0 %v48
    %801 = vmatpush.msra.mxu0 %v47
    %802 = vmatmul.f32.gmra.mxu0 %v781
    %v803 = vpop.f32.mrf.mxu0
    %v804 = vadd.f32 %v778, %v803
    %805 = vmatmul.f32.gmra.mxu0 %v784
    %v806 = vpop.f32.mrf.mxu0
    %v807 = vadd.f32 %v778, %v806
    %808 = vdwg.mxu0
    %v809 = vsel %vm64, %v804, 0.0
    %810 = vadd.xlane.f32.xlu0 %v809
    %v811 = vpop.xlane.xlu0 %810
    %v812 = vsel %vm64, %v807, 0.0
    %813 = vadd.xlane.f32.xlu0 %v812
    %v814 = vpop.xlane.xlu0 %813
    %v815 = vmul.f32 %v811, %v695
    %v816 = vmul.f32 %v814, %v695
    %v817 = vsub.f32 %v804, %v815
    %v818 = vsub.f32 %v807, %v816
    %v819 = vmul.f32 %v817, %v817
    %v820 = vmul.f32 %v818, %v818
    %v821 = vsel %vm64, %v819, 0.0
    %822 = vadd.xlane.f32.xlu0 %v821
    %v823 = vpop.xlane.xlu0 %822
    %v824 = vsel %vm64, %v820, 0.0
    %825 = vadd.xlane.f32.xlu0 %v824
    %v826 = vpop.xlane.xlu0 %825
    %v827 = vmul.f32 %v823, %v695
    %v828 = vmul.f32 %v826, %v695
    %v829 = vadd.f32 %v827, 1e-05
    %v830 = vadd.f32 %v828, 1e-05
    %v831 = vrsqrt.pop %v829
    %v832 = vmul.f32 %v831, %v829
    %v833 = vmul.f32 %v832, %v831
    %v834 = vmul.f32 0.5, %v833
    %v835 = vsub.f32 1.5, %v834
    %v836 = vmul.f32 %v831, %v835
    %vm837 = vweird.f32 %v829
    %vm838 = vweird.f32 %v831
    %vm839 = vmor %vm837, %vm838
    %v840 = vsel %vm839, %v831, %v836
    %v841 = vrsqrt.pop %v830
    %v842 = vmul.f32 %v841, %v830
    %v843 = vmul.f32 %v842, %v841
    %v844 = vmul.f32 0.5, %v843
    %v845 = vsub.f32 1.5, %v844
    %v846 = vmul.f32 %v841, %v845
    %vm847 = vweird.f32 %v830
    %vm848 = vweird.f32 %v841
    %vm849 = vmor %vm847, %vm848
    %v850 = vsel %vm849, %v841, %v846
    %v851 = vmul.f32 %v817, %v840
    %v852 = vmul.f32 %v818, %v850
    %v853 = vmul.f32 %v851, %v734
    %v854 = vmul.f32 %v852, %v734
    %v855 = vadd.f32 %v853, %v737
    %v856 = vadd.f32 %v854, %v737
    %v857 = vadd.f32 %v804, %v855
    %v858 = vadd.f32 %v807, %v856
    %v859 = vsel %vm64, %v742, 0.0
    %860 = vadd.xlane.f32.xlu0 %v859
    %v861 = vpop.xlane.xlu0 %860
    %v862 = vsel %vm64, %v743, 0.0
    %863 = vadd.xlane.f32.xlu0 %v862
    %v864 = vpop.xlane.xlu0 %863
    %v865 = vmul.f32 %v861, %v695
    %v866 = vmul.f32 %v864, %v695
    %v867 = vsub.f32 %v742, %v865
    %v868 = vsub.f32 %v743, %v866
    %v869 = vmul.f32 %v867, %v867
    %v870 = vmul.f32 %v868, %v868
    %v871 = vsel %vm64, %v869, 0.0
    %872 = vadd.xlane.f32.xlu0 %v871
    %v873 = vpop.xlane.xlu0 %872
    %v874 = vsel %vm64, %v870, 0.0
    %875 = vadd.xlane.f32.xlu0 %v874
    %v876 = vpop.xlane.xlu0 %875
    %v877 = vmul.f32 %v873, %v695
    %v878 = vmul.f32 %v876, %v695
    %v879 = vadd.f32 %v877, 1e-05
    %v880 = vadd.f32 %v878, 1e-05
    %v881 = vrsqrt.pop %v879
    %v882 = vmul.f32 %v881, %v879
    %v883 = vmul.f32 %v882, %v881
    %v884 = vmul.f32 0.5, %v883
    %v885 = vsub.f32 1.5, %v884
    %v886 = vmul.f32 %v881, %v885
    %vm887 = vweird.f32 %v879
    %vm888 = vweird.f32 %v881
    %vm889 = vmor %vm887, %vm888
    %v890 = vsel %vm889, %v881, %v886
    %v891 = vrsqrt.pop %v880
    %v892 = vmul.f32 %v891, %v880
    %v893 = vmul.f32 %v892, %v891
    %v894 = vmul.f32 0.5, %v893
    %v895 = vsub.f32 1.5, %v894
    %v896 = vmul.f32 %v891, %v895
    %vm897 = vweird.f32 %v880
    %vm898 = vweird.f32 %v891
    %vm899 = vmor %vm897, %vm898
    %v900 = vsel %vm899, %v891, %v896
    %v901 = vmul.f32 %v867, %v890
    %v902 = vmul.f32 %v868, %v900
    %v903 = vperm.slane %v55, 3
    %v904 = vmul.f32 %v901, %v903
    %v905 = vmul.f32 %v902, %v903
    %v906 = vperm.slane %v55, 4
    %v907 = vadd.f32 %v904, %v906
    %v908 = vadd.f32 %v905, %v906
    %v909 = vadd.f32 %v742, %v907
    %v910 = vadd.f32 %v743, %v908
    %v911 = vadd.f32 %v909, %v857
    %v912 = vadd.f32 %v910, %v858
    %v913 = vadd.f32 %v857, %v911
    %v914 = vadd.f32 %v858, %v912
    %v916 = vsel %vm64, %v913, 0
    %v919 = vsel %vm64, %v914, 0
    %921 = vmatpush.msra.mxu0 0.0
    %922 = vmatpush.msra.mxu0 0.0
    %923 = vmatpush.msra.mxu0 0.0
    %924 = vmatpush.msra.mxu0 0.0
    %925 = vmatpush.msra.mxu0 0.0
    %926 = vmatpush.msra.mxu0 0.0
    %927 = vmatpush.msra.mxu0 0.0
    %928 = vmatpush.msra.mxu0 0.0
    %929 = vmatpush.msra.mxu0 0.0
    %930 = vmatpush.msra.mxu0 0.0
    %931 = vmatpush.msra.mxu0 0.0
    %932 = vmatpush.msra.mxu0 0.0
    %933 = vmatpush.msra.mxu0 %v36
    %934 = vmatpush.msra.mxu0 %v35
    %935 = vmatpush.msra.mxu0 %v34
    %936 = vmatpush.msra.mxu0 %v33
    %937 = vmatmul.f32.gmra.mxu0 %v916
    %v938 = vpop.f32.mrf.mxu0
    %v939 = vadd.f32 %v62, %v938
    %940 = vmatmul.f32.gmra.mxu0 %v919
    %v941 = vpop.f32.mrf.mxu0
    %v942 = vadd.f32 %v62, %v941
    %943 = vdwg.mxu0
    %945 = vrot.lane.b32.xlu0 %v939, 96
    %v946 = vpop.permute.xlu0 %945
    %v947 = vsel %vm97, %v939, 0
    %v949 = vsel %vm97, %v946, 0
    %951 = vmatpush.xpose.msra.mxu0 0.0
    %952 = vmatpush.xpose.msra.mxu0 0.0
    %953 = vmatpush.xpose.msra.mxu0 0.0
    %954 = vmatpush.xpose.msra.mxu0 0.0
    %955 = vmatpush.xpose.msra.mxu0 0.0
    %956 = vmatpush.xpose.msra.mxu0 0.0
    %957 = vmatpush.xpose.msra.mxu0 0.0
    %958 = vmatpush.xpose.msra.mxu0 0.0
    %959 = vmatpush.xpose.msra.mxu0 0.0
    %960 = vmatpush.xpose.msra.mxu0 0.0
    %961 = vmatpush.xpose.msra.mxu0 0.0
    %962 = vmatpush.xpose.msra.mxu0 0.0
    %963 = vmatpush.xpose.msra.mxu0 0.0
    %964 = vmatpush.xpose.msra.mxu0 0.0
    %965 = vmatpush.xpose.msra.mxu0 0.0
    %966 = vmatpush.xpose.msra.mxu0 %v949
    %967 = vmatmul.f32.gmra.mxu0 %v947
    %v968 = vpop.f32.mrf.mxu0
    %v969 = vadd.f32 0.0, %v968
    %970 = vdwg.mxu0
    %972 = vrot.lane.b32.xlu0 %v942, 96
    %v973 = vpop.permute.xlu0 %972
    %v974 = vsel %vm97, %v942, 0
    %v976 = vsel %vm97, %v973, 0
    %978 = vmatpush.xpose.msra.mxu0 0.0
    %979 = vmatpush.xpose.msra.mxu0 0.0
    %980 = vmatpush.xpose.msra.mxu0 0.0
    %981 = vmatpush.xpose.msra.mxu0 0.0
    %982 = vmatpush.xpose.msra.mxu0 0.0
    %983 = vmatpush.xpose.msra.mxu0 0.0
    %984 = vmatpush.xpose.msra.mxu0 0.0
    %985 = vmatpush.xpose.msra.mxu0 0.0
    %986 = vmatpush.xpose.msra.mxu0 0.0
    %987 = vmatpush.xpose.msra.mxu0 0.0
    %988 = vmatpush.xpose.msra.mxu0 0.0
    %989 = vmatpush.xpose.msra.mxu0 0.0
    %990 = vmatpush.xpose.msra.mxu0 0.0
    %991 = vmatpush.xpose.msra.mxu0 0.0
    %992 = vmatpush.xpose.msra.mxu0 0.0
    %993 = vmatpush.xpose.msra.mxu0 %v976
    %994 = vmatmul.f32.gmra.mxu0 %v974
    %v995 = vpop.f32.mrf.mxu0
    %v996 = vadd.f32 0.0, %v995
    %997 = vdwg.mxu0
    %v998 = vmul.f32 %v969, 0.35355338
    %v999 = vmul.f32 %v996, 0.35355338
    %1000 = vrot.lane.b32.xlu0 %v939, 64
    %v1001 = vpop.permute.xlu0 %1000
    %v1004 = vsel %vm97, %v998, 0
    %1006 = vmatpush.msra.mxu0 0.0
    %1007 = vmatpush.msra.mxu0 0.0
    %1008 = vmatpush.msra.mxu0 0.0
    %1009 = vmatpush.msra.mxu0 0.0
    %1010 = vmatpush.msra.mxu0 0.0
    %1011 = vmatpush.msra.mxu0 0.0
    %1012 = vmatpush.msra.mxu0 0.0
    %1013 = vmatpush.msra.mxu0 0.0
    %1014 = vmatpush.msra.mxu0 0.0
    %1015 = vmatpush.msra.mxu0 0.0
    %1016 = vmatpush.msra.mxu0 0.0
    %1017 = vmatpush.msra.mxu0 0.0
    %1018 = vmatpush.msra.mxu0 0.0
    %1019 = vmatpush.msra.mxu0 0.0
    %1020 = vmatpush.msra.mxu0 0.0
    %1021 = vmatpush.msra.mxu0 %v1001
    %1022 = vmatmul.f32.gmra.mxu0 %v1004
    %v1023 = vpop.f32.mrf.mxu0
    %v1024 = vadd.f32 0.0, %v1023
    %1025 = vdwg.mxu0
    %1026 = vrot.lane.b32.xlu0 %v942, 64
    %v1027 = vpop.permute.xlu0 %1026
    %v1030 = vsel %vm97, %v999, 0
    %1032 = vmatpush.msra.mxu0 0.0
    %1033 = vmatpush.msra.mxu0 0.0
    %1034 = vmatpush.msra.mxu0 0.0
    %1035 = vmatpush.msra.mxu0 0.0
    %1036 = vmatpush.msra.mxu0 0.0
    %1037 = vmatpush.msra.mxu0 0.0
    %1038 = vmatpush.msra.mxu0 0.0
    %1039 = vmatpush.msra.mxu0 0.0
    %1040 = vmatpush.msra.mxu0 0.0
    %1041 = vmatpush.msra.mxu0 0.0
    %1042 = vmatpush.msra.mxu0 0.0
    %1043 = vmatpush.msra.mxu0 0.0
    %1044 = vmatpush.msra.mxu0 0.0
    %1045 = vmatpush.msra.mxu0 0.0
    %1046 = vmatpush.msra.mxu0 0.0
    %1047 = vmatpush.msra.mxu0 %v1027
    %1048 = vmatmul.f32.gmra.mxu0 %v1030
    %v1049 = vpop.f32.mrf.mxu0
    %v1050 = vadd.f32 0.0, %v1049
    %1051 = vdwg.mxu0
    %v1052 = vsel %vm97, %v1024, -inf
    %1053 = vmax.xlane.f32.xlu0 %v1052
    %v1054 = vpop.xlane.xlu0 %1053
    %v1055 = vsel %vm97, %v1050, -inf
    %1056 = vmax.xlane.f32.xlu0 %v1055
    %v1057 = vpop.xlane.xlu0 %1056
    %v1058 = vsub.f32 %v1024, %v1054
    %v1059 = vsub.f32 %v1050, %v1057
    %v1060 = vmul.f32 %v1058, 1.442695
    %v1061 = vpow.pop %v1060
    %v1062 = vmul.f32 %v1059, 1.442695
    %v1063 = vpow.pop %v1062
    %v1064 = vsel %vm97, %v1061, 0.0
    %1065 = vadd.xlane.f32.xlu0 %v1064
    %v1066 = vpop.xlane.xlu0 %1065
    %v1067 = vsel %vm97, %v1063, 0.0
    %1068 = vadd.xlane.f32.xlu0 %v1067
    %v1069 = vpop.xlane.xlu0 %1068
    %v1070 = vrcp.pop %v1066
    %v1071 = vrcp.pop %v1069
    %v1072 = vmul.f32 %v1061, %v1070
    %v1073 = vmul.f32 %v1063, %v1071
    %1074 = vrot.lane.b32.xlu0 %v939, 120
    %v1075 = vpop.permute.xlu0 %1074
    %1076 = vrot.lane.b32.xlu0 %v939, 88
    %v1077 = vpop.permute.xlu0 %1076
    %v1078 = vsel %vm97, %v1075, 0
    %v1080 = vsel %vm97, %v1077, 0
    %1082 = vmatpush.xpose.msra.mxu0 0.0
    %1083 = vmatpush.xpose.msra.mxu0 0.0
    %1084 = vmatpush.xpose.msra.mxu0 0.0
    %1085 = vmatpush.xpose.msra.mxu0 0.0
    %1086 = vmatpush.xpose.msra.mxu0 0.0
    %1087 = vmatpush.xpose.msra.mxu0 0.0
    %1088 = vmatpush.xpose.msra.mxu0 0.0
    %1089 = vmatpush.xpose.msra.mxu0 0.0
    %1090 = vmatpush.xpose.msra.mxu0 0.0
    %1091 = vmatpush.xpose.msra.mxu0 0.0
    %1092 = vmatpush.xpose.msra.mxu0 0.0
    %1093 = vmatpush.xpose.msra.mxu0 0.0
    %1094 = vmatpush.xpose.msra.mxu0 0.0
    %1095 = vmatpush.xpose.msra.mxu0 0.0
    %1096 = vmatpush.xpose.msra.mxu0 0.0
    %1097 = vmatpush.xpose.msra.mxu0 %v1080
    %1098 = vmatmul.f32.gmra.mxu0 %v1078
    %v1099 = vpop.f32.mrf.mxu0
    %v1100 = vadd.f32 0.0, %v1099
    %1101 = vdwg.mxu0
    %1102 = vrot.lane.b32.xlu0 %v942, 120
    %v1103 = vpop.permute.xlu0 %1102
    %1104 = vrot.lane.b32.xlu0 %v942, 88
    %v1105 = vpop.permute.xlu0 %1104
    %v1106 = vsel %vm97, %v1103, 0
    %v1108 = vsel %vm97, %v1105, 0
    %1110 = vmatpush.xpose.msra.mxu0 0.0
    %1111 = vmatpush.xpose.msra.mxu0 0.0
    %1112 = vmatpush.xpose.msra.mxu0 0.0
    %1113 = vmatpush.xpose.msra.mxu0 0.0
    %1114 = vmatpush.xpose.msra.mxu0 0.0
    %1115 = vmatpush.xpose.msra.mxu0 0.0
    %1116 = vmatpush.xpose.msra.mxu0 0.0
    %1117 = vmatpush.xpose.msra.mxu0 0.0
    %1118 = vmatpush.xpose.msra.mxu0 0.0
    %1119 = vmatpush.xpose.msra.mxu0 0.0
    %1120 = vmatpush.xpose.msra.mxu0 0.0
    %1121 = vmatpush.xpose.msra.mxu0 0.0
    %1122 = vmatpush.xpose.msra.mxu0 0.0
    %1123 = vmatpush.xpose.msra.mxu0 0.0
    %1124 = vmatpush.xpose.msra.mxu0 0.0
    %1125 = vmatpush.xpose.msra.mxu0 %v1108
    %1126 = vmatmul.f32.gmra.mxu0 %v1106
    %v1127 = vpop.f32.mrf.mxu0
    %v1128 = vadd.f32 0.0, %v1127
    %1129 = vdwg.mxu0
    %v1130 = vmul.f32 %v1100, 0.35355338
    %v1131 = vmul.f32 %v1128, 0.35355338
    %1132 = vrot.lane.b32.xlu0 %v939, 56
    %v1133 = vpop.permute.xlu0 %1132
    %v1136 = vsel %vm97, %v1130, 0
    %1138 = vmatpush.msra.mxu0 0.0
    %1139 = vmatpush.msra.mxu0 0.0
    %1140 = vmatpush.msra.mxu0 0.0
    %1141 = vmatpush.msra.mxu0 0.0
    %1142 = vmatpush.msra.mxu0 0.0
    %1143 = vmatpush.msra.mxu0 0.0
    %1144 = vmatpush.msra.mxu0 0.0
    %1145 = vmatpush.msra.mxu0 0.0
    %1146 = vmatpush.msra.mxu0 0.0
    %1147 = vmatpush.msra.mxu0 0.0
    %1148 = vmatpush.msra.mxu0 0.0
    %1149 = vmatpush.msra.mxu0 0.0
    %1150 = vmatpush.msra.mxu0 0.0
    %1151 = vmatpush.msra.mxu0 0.0
    %1152 = vmatpush.msra.mxu0 0.0
    %1153 = vmatpush.msra.mxu0 %v1133
    %1154 = vmatmul.f32.gmra.mxu0 %v1136
    %v1155 = vpop.f32.mrf.mxu0
    %v1156 = vadd.f32 0.0, %v1155
    %1157 = vdwg.mxu0
    %1158 = vrot.lane.b32.xlu0 %v942, 56
    %v1159 = vpop.permute.xlu0 %1158
    %v1162 = vsel %vm97, %v1131, 0
    %1164 = vmatpush.msra.mxu0 0.0
    %1165 = vmatpush.msra.mxu0 0.0
    %1166 = vmatpush.msra.mxu0 0.0
    %1167 = vmatpush.msra.mxu0 0.0
    %1168 = vmatpush.msra.mxu0 0.0
    %1169 = vmatpush.msra.mxu0 0.0
    %1170 = vmatpush.msra.mxu0 0.0
    %1171 = vmatpush.msra.mxu0 0.0
    %1172 = vmatpush.msra.mxu0 0.0
    %1173 = vmatpush.msra.mxu0 0.0
    %1174 = vmatpush.msra.mxu0 0.0
    %1175 = vmatpush.msra.mxu0 0.0
    %1176 = vmatpush.msra.mxu0 0.0
    %1177 = vmatpush.msra.mxu0 0.0
    %1178 = vmatpush.msra.mxu0 0.0
    %1179 = vmatpush.msra.mxu0 %v1159
    %1180 = vmatmul.f32.gmra.mxu0 %v1162
    %v1181 = vpop.f32.mrf.mxu0
    %v1182 = vadd.f32 0.0, %v1181
    %1183 = vdwg.mxu0
    %v1184 = vsel %vm97, %v1156, -inf
    %1185 = vmax.xlane.f32.xlu0 %v1184
    %v1186 = vpop.xlane.xlu0 %1185
    %v1187 = vsel %vm97, %v1182, -inf
    %1188 = vmax.xlane.f32.xlu0 %v1187
    %v1189 = vpop.xlane.xlu0 %1188
    %v1190 = vsub.f32 %v1156, %v1186
    %v1191 = vsub.f32 %v1182, %v1189
    %v1192 = vmul.f32 %v1190, 1.442695
    %v1193 = vpow.pop %v1192
    %v1194 = vmul.f32 %v1191, 1.442695
    %v1195 = vpow.pop %v1194
    %v1196 = vsel %vm97, %v1193, 0.0
    %1197 = vadd.xlane.f32.xlu0 %v1196
    %v1198 = vpop.xlane.xlu0 %1197
    %v1199 = vsel %vm97, %v1195, 0.0
    %1200 = vadd.xlane.f32.xlu0 %v1199
    %v1201 = vpop.xlane.xlu0 %1200
    %v1202 = vrcp.pop %v1198
    %v1203 = vrcp.pop %v1201
    %v1204 = vmul.f32 %v1193, %v1202
    %v1205 = vmul.f32 %v1195, %v1203
    %1206 = vrot.lane.b32.xlu0 %v939, 112
    %v1207 = vpop.permute.xlu0 %1206
    %1208 = vrot.lane.b32.xlu0 %v939, 80
    %v1209 = vpop.permute.xlu0 %1208
    %v1210 = vsel %vm97, %v1207, 0
    %v1212 = vsel %vm97, %v1209, 0
    %1214 = vmatpush.xpose.msra.mxu0 0.0
    %1215 = vmatpush.xpose.msra.mxu0 0.0
    %1216 = vmatpush.xpose.msra.mxu0 0.0
    %1217 = vmatpush.xpose.msra.mxu0 0.0
    %1218 = vmatpush.xpose.msra.mxu0 0.0
    %1219 = vmatpush.xpose.msra.mxu0 0.0
    %1220 = vmatpush.xpose.msra.mxu0 0.0
    %1221 = vmatpush.xpose.msra.mxu0 0.0
    %1222 = vmatpush.xpose.msra.mxu0 0.0
    %1223 = vmatpush.xpose.msra.mxu0 0.0
    %1224 = vmatpush.xpose.msra.mxu0 0.0
    %1225 = vmatpush.xpose.msra.mxu0 0.0
    %1226 = vmatpush.xpose.msra.mxu0 0.0
    %1227 = vmatpush.xpose.msra.mxu0 0.0
    %1228 = vmatpush.xpose.msra.mxu0 0.0
    %1229 = vmatpush.xpose.msra.mxu0 %v1212
    %1230 = vmatmul.f32.gmra.mxu0 %v1210
    %v1231 = vpop.f32.mrf.mxu0
    %v1232 = vadd.f32 0.0, %v1231
    %1233 = vdwg.mxu0
    %1234 = vrot.lane.b32.xlu0 %v942, 112
    %v1235 = vpop.permute.xlu0 %1234
    %1236 = vrot.lane.b32.xlu0 %v942, 80
    %v1237 = vpop.permute.xlu0 %1236
    %v1238 = vsel %vm97, %v1235, 0
    %v1240 = vsel %vm97, %v1237, 0
    %1242 = vmatpush.xpose.msra.mxu0 0.0
    %1243 = vmatpush.xpose.msra.mxu0 0.0
    %1244 = vmatpush.xpose.msra.mxu0 0.0
    %1245 = vmatpush.xpose.msra.mxu0 0.0
    %1246 = vmatpush.xpose.msra.mxu0 0.0
    %1247 = vmatpush.xpose.msra.mxu0 0.0
    %1248 = vmatpush.xpose.msra.mxu0 0.0
    %1249 = vmatpush.xpose.msra.mxu0 0.0
    %1250 = vmatpush.xpose.msra.mxu0 0.0
    %1251 = vmatpush.xpose.msra.mxu0 0.0
    %1252 = vmatpush.xpose.msra.mxu0 0.0
    %1253 = vmatpush.xpose.msra.mxu0 0.0
    %1254 = vmatpush.xpose.msra.mxu0 0.0
    %1255 = vmatpush.xpose.msra.mxu0 0.0
    %1256 = vmatpush.xpose.msra.mxu0 0.0
    %1257 = vmatpush.xpose.msra.mxu0 %v1240
    %1258 = vmatmul.f32.gmra.mxu0 %v1238
    %v1259 = vpop.f32.mrf.mxu0
    %v1260 = vadd.f32 0.0, %v1259
    %1261 = vdwg.mxu0
    %v1262 = vmul.f32 %v1232, 0.35355338
    %v1263 = vmul.f32 %v1260, 0.35355338
    %1264 = vrot.lane.b32.xlu0 %v939, 48
    %v1265 = vpop.permute.xlu0 %1264
    %v1268 = vsel %vm97, %v1262, 0
    %1270 = vmatpush.msra.mxu0 0.0
    %1271 = vmatpush.msra.mxu0 0.0
    %1272 = vmatpush.msra.mxu0 0.0
    %1273 = vmatpush.msra.mxu0 0.0
    %1274 = vmatpush.msra.mxu0 0.0
    %1275 = vmatpush.msra.mxu0 0.0
    %1276 = vmatpush.msra.mxu0 0.0
    %1277 = vmatpush.msra.mxu0 0.0
    %1278 = vmatpush.msra.mxu0 0.0
    %1279 = vmatpush.msra.mxu0 0.0
    %1280 = vmatpush.msra.mxu0 0.0
    %1281 = vmatpush.msra.mxu0 0.0
    %1282 = vmatpush.msra.mxu0 0.0
    %1283 = vmatpush.msra.mxu0 0.0
    %1284 = vmatpush.msra.mxu0 0.0
    %1285 = vmatpush.msra.mxu0 %v1265
    %1286 = vmatmul.f32.gmra.mxu0 %v1268
    %v1287 = vpop.f32.mrf.mxu0
    %v1288 = vadd.f32 0.0, %v1287
    %1289 = vdwg.mxu0
    %1290 = vrot.lane.b32.xlu0 %v942, 48
    %v1291 = vpop.permute.xlu0 %1290
    %v1294 = vsel %vm97, %v1263, 0
    %1296 = vmatpush.msra.mxu0 0.0
    %1297 = vmatpush.msra.mxu0 0.0
    %1298 = vmatpush.msra.mxu0 0.0
    %1299 = vmatpush.msra.mxu0 0.0
    %1300 = vmatpush.msra.mxu0 0.0
    %1301 = vmatpush.msra.mxu0 0.0
    %1302 = vmatpush.msra.mxu0 0.0
    %1303 = vmatpush.msra.mxu0 0.0
    %1304 = vmatpush.msra.mxu0 0.0
    %1305 = vmatpush.msra.mxu0 0.0
    %1306 = vmatpush.msra.mxu0 0.0
    %1307 = vmatpush.msra.mxu0 0.0
    %1308 = vmatpush.msra.mxu0 0.0
    %1309 = vmatpush.msra.mxu0 0.0
    %1310 = vmatpush.msra.mxu0 0.0
    %1311 = vmatpush.msra.mxu0 %v1291
    %1312 = vmatmul.f32.gmra.mxu0 %v1294
    %v1313 = vpop.f32.mrf.mxu0
    %v1314 = vadd.f32 0.0, %v1313
    %1315 = vdwg.mxu0
    %v1316 = vsel %vm97, %v1288, -inf
    %1317 = vmax.xlane.f32.xlu0 %v1316
    %v1318 = vpop.xlane.xlu0 %1317
    %v1319 = vsel %vm97, %v1314, -inf
    %1320 = vmax.xlane.f32.xlu0 %v1319
    %v1321 = vpop.xlane.xlu0 %1320
    %v1322 = vsub.f32 %v1288, %v1318
    %v1323 = vsub.f32 %v1314, %v1321
    %v1324 = vmul.f32 %v1322, 1.442695
    %v1325 = vpow.pop %v1324
    %v1326 = vmul.f32 %v1323, 1.442695
    %v1327 = vpow.pop %v1326
    %v1328 = vsel %vm97, %v1325, 0.0
    %1329 = vadd.xlane.f32.xlu0 %v1328
    %v1330 = vpop.xlane.xlu0 %1329
    %v1331 = vsel %vm97, %v1327, 0.0
    %1332 = vadd.xlane.f32.xlu0 %v1331
    %v1333 = vpop.xlane.xlu0 %1332
    %v1334 = vrcp.pop %v1330
    %v1335 = vrcp.pop %v1333
    %v1336 = vmul.f32 %v1325, %v1334
    %v1337 = vmul.f32 %v1327, %v1335
    %1338 = vrot.lane.b32.xlu0 %v939, 104
    %v1339 = vpop.permute.xlu0 %1338
    %1340 = vrot.lane.b32.xlu0 %v939, 72
    %v1341 = vpop.permute.xlu0 %1340
    %v1342 = vsel %vm97, %v1339, 0
    %v1344 = vsel %vm97, %v1341, 0
    %1346 = vmatpush.xpose.msra.mxu0 0.0
    %1347 = vmatpush.xpose.msra.mxu0 0.0
    %1348 = vmatpush.xpose.msra.mxu0 0.0
    %1349 = vmatpush.xpose.msra.mxu0 0.0
    %1350 = vmatpush.xpose.msra.mxu0 0.0
    %1351 = vmatpush.xpose.msra.mxu0 0.0
    %1352 = vmatpush.xpose.msra.mxu0 0.0
    %1353 = vmatpush.xpose.msra.mxu0 0.0
    %1354 = vmatpush.xpose.msra.mxu0 0.0
    %1355 = vmatpush.xpose.msra.mxu0 0.0
    %1356 = vmatpush.xpose.msra.mxu0 0.0
    %1357 = vmatpush.xpose.msra.mxu0 0.0
    %1358 = vmatpush.xpose.msra.mxu0 0.0
    %1359 = vmatpush.xpose.msra.mxu0 0.0
    %1360 = vmatpush.xpose.msra.mxu0 0.0
    %1361 = vmatpush.xpose.msra.mxu0 %v1344
    %1362 = vmatmul.f32.gmra.mxu0 %v1342
    %v1363 = vpop.f32.mrf.mxu0
    %v1364 = vadd.f32 0.0, %v1363
    %1365 = vdwg.mxu0
    %1366 = vrot.lane.b32.xlu0 %v942, 104
    %v1367 = vpop.permute.xlu0 %1366
    %1368 = vrot.lane.b32.xlu0 %v942, 72
    %v1369 = vpop.permute.xlu0 %1368
    %v1370 = vsel %vm97, %v1367, 0
    %v1372 = vsel %vm97, %v1369, 0
    %1374 = vmatpush.xpose.msra.mxu0 0.0
    %1375 = vmatpush.xpose.msra.mxu0 0.0
    %1376 = vmatpush.xpose.msra.mxu0 0.0
    %1377 = vmatpush.xpose.msra.mxu0 0.0
    %1378 = vmatpush.xpose.msra.mxu0 0.0
    %1379 = vmatpush.xpose.msra.mxu0 0.0
    %1380 = vmatpush.xpose.msra.mxu0 0.0
    %1381 = vmatpush.xpose.msra.mxu0 0.0
    %1382 = vmatpush.xpose.msra.mxu0 0.0
    %1383 = vmatpush.xpose.msra.mxu0 0.0
    %1384 = vmatpush.xpose.msra.mxu0 0.0
    %1385 = vmatpush.xpose.msra.mxu0 0.0
    %1386 = vmatpush.xpose.msra.mxu0 0.0
    %1387 = vmatpush.xpose.msra.mxu0 0.0
    %1388 = vmatpush.xpose.msra.mxu0 0.0
    %1389 = vmatpush.xpose.msra.mxu0 %v1372
    %1390 = vmatmul.f32.gmra.mxu0 %v1370
    %v1391 = vpop.f32.mrf.mxu0
    %v1392 = vadd.f32 0.0, %v1391
    %1393 = vdwg.mxu0
    %v1394 = vmul.f32 %v1364, 0.35355338
    %v1395 = vmul.f32 %v1392, 0.35355338
    %1396 = vrot.lane.b32.xlu0 %v939, 40
    %v1397 = vpop.permute.xlu0 %1396
    %v1400 = vsel %vm97, %v1394, 0
    %1402 = vmatpush.msra.mxu0 0.0
    %1403 = vmatpush.msra.mxu0 0.0
    %1404 = vmatpush.msra.mxu0 0.0
    %1405 = vmatpush.msra.mxu0 0.0
    %1406 = vmatpush.msra.mxu0 0.0
    %1407 = vmatpush.msra.mxu0 0.0
    %1408 = vmatpush.msra.mxu0 0.0
    %1409 = vmatpush.msra.mxu0 0.0
    %1410 = vmatpush.msra.mxu0 0.0
    %1411 = vmatpush.msra.mxu0 0.0
    %1412 = vmatpush.msra.mxu0 0.0
    %1413 = vmatpush.msra.mxu0 0.0
    %1414 = vmatpush.msra.mxu0 0.0
    %1415 = vmatpush.msra.mxu0 0.0
    %1416 = vmatpush.msra.mxu0 0.0
    %1417 = vmatpush.msra.mxu0 %v1397
    %1418 = vmatmul.f32.gmra.mxu0 %v1400
    %v1419 = vpop.f32.mrf.mxu0
    %v1420 = vadd.f32 0.0, %v1419
    %1421 = vdwg.mxu0
    %1422 = vrot.lane.b32.xlu0 %v942, 40
    %v1423 = vpop.permute.xlu0 %1422
    %v1426 = vsel %vm97, %v1395, 0
    %1428 = vmatpush.msra.mxu0 0.0
    %1429 = vmatpush.msra.mxu0 0.0
    %1430 = vmatpush.msra.mxu0 0.0
    %1431 = vmatpush.msra.mxu0 0.0
    %1432 = vmatpush.msra.mxu0 0.0
    %1433 = vmatpush.msra.mxu0 0.0
    %1434 = vmatpush.msra.mxu0 0.0
    %1435 = vmatpush.msra.mxu0 0.0
    %1436 = vmatpush.msra.mxu0 0.0
    %1437 = vmatpush.msra.mxu0 0.0
    %1438 = vmatpush.msra.mxu0 0.0
    %1439 = vmatpush.msra.mxu0 0.0
    %1440 = vmatpush.msra.mxu0 0.0
    %1441 = vmatpush.msra.mxu0 0.0
    %1442 = vmatpush.msra.mxu0 0.0
    %1443 = vmatpush.msra.mxu0 %v1423
    %1444 = vmatmul.f32.gmra.mxu0 %v1426
    %v1445 = vpop.f32.mrf.mxu0
    %v1446 = vadd.f32 0.0, %v1445
    %1447 = vdwg.mxu0
    %v1448 = vsel %vm97, %v1420, -inf
    %1449 = vmax.xlane.f32.xlu0 %v1448
    %v1450 = vpop.xlane.xlu0 %1449
    %v1451 = vsel %vm97, %v1446, -inf
    %1452 = vmax.xlane.f32.xlu0 %v1451
    %v1453 = vpop.xlane.xlu0 %1452
    %v1454 = vsub.f32 %v1420, %v1450
    %v1455 = vsub.f32 %v1446, %v1453
    %v1456 = vmul.f32 %v1454, 1.442695
    %v1457 = vpow.pop %v1456
    %v1458 = vmul.f32 %v1455, 1.442695
    %v1459 = vpow.pop %v1458
    %v1460 = vsel %vm97, %v1457, 0.0
    %1461 = vadd.xlane.f32.xlu0 %v1460
    %v1462 = vpop.xlane.xlu0 %1461
    %v1463 = vsel %vm97, %v1459, 0.0
    %1464 = vadd.xlane.f32.xlu0 %v1463
    %v1465 = vpop.xlane.xlu0 %1464
    %v1466 = vrcp.pop %v1462
    %v1467 = vrcp.pop %v1465
    %v1468 = vmul.f32 %v1457, %v1466
    %v1469 = vmul.f32 %v1459, %v1467
    %1472 = vrot.lane.b32.xlu0 %v1204, 8
    %v1473 = vpop.permute.xlu0 %1472
    %1474 = vrot.lane.b32.xlu0 %v1205, 8
    %v1475 = vpop.permute.xlu0 %1474
    %1480 = vrot.lane.b32.xlu0 %v1336, 16
    %v1481 = vpop.permute.xlu0 %1480
    %1482 = vrot.lane.b32.xlu0 %v1337, 16
    %v1483 = vpop.permute.xlu0 %1482
    %1488 = vrot.lane.b32.xlu0 %v1468, 24
    %v1489 = vpop.permute.xlu0 %1488
    %1490 = vrot.lane.b32.xlu0 %v1469, 24
    %v1491 = vpop.permute.xlu0 %1490
    %v1494 = vsel %vm97, %v1072, %v1473
    %v1495 = vsel %vm97, %v1073, %v1475
    %v1496 = vsel %vm647, %v1494, %v1481
    %v1497 = vsel %vm647, %v1495, %v1483
    %v1498 = vsel %vm650, %v1496, %v1489
    %v1499 = vsel %vm650, %v1497, %v1491
    %v1501 = vsel %vm64, %v1498, 0
    %v1504 = vsel %vm64, %v1499, 0
    %1506 = vmatpush.msra.mxu0 0.0
    %1507 = vmatpush.msra.mxu0 0.0
    %1508 = vmatpush.msra.mxu0 0.0
    %1509 = vmatpush.msra.mxu0 0.0
    %1510 = vmatpush.msra.mxu0 0.0
    %1511 = vmatpush.msra.mxu0 0.0
    %1512 = vmatpush.msra.mxu0 0.0
    %1513 = vmatpush.msra.mxu0 0.0
    %1514 = vmatpush.msra.mxu0 0.0
    %1515 = vmatpush.msra.mxu0 0.0
    %1516 = vmatpush.msra.mxu0 0.0
    %1517 = vmatpush.msra.mxu0 0.0
    %1518 = vmatpush.msra.mxu0 %v41
    %1519 = vmatpush.msra.mxu0 %v40
    %1520 = vmatpush.msra.mxu0 %v39
    %1521 = vmatpush.msra.mxu0 %v38
    %1522 = vmatmul.f32.gmra.mxu0 %v1501
    %v1523 = vpop.f32.mrf.mxu0
    %v1524 = vadd.f32 %v653, %v1523
    %1525 = vmatmul.f32.gmra.mxu0 %v1504
    %v1526 = vpop.f32.mrf.mxu0
    %v1527 = vadd.f32 %v653, %v1526
    %1528 = vdwg.mxu0
    %v1529 = vsel %vm64, %v1524, 0.0
    %1530 = vadd.xlane.f32.xlu0 %v1529
    %v1531 = vpop.xlane.xlu0 %1530
    %v1532 = vsel %vm64, %v1527, 0.0
    %1533 = vadd.xlane.f32.xlu0 %v1532
    %v1534 = vpop.xlane.xlu0 %1533
    %v1535 = vmul.f32 %v1531, %v695
    %v1536 = vmul.f32 %v1534, %v695
    %v1537 = vsub.f32 %v1524, %v1535
    %v1538 = vsub.f32 %v1527, %v1536
    %v1539 = vmul.f32 %v1537, %v1537
    %v1540 = vmul.f32 %v1538, %v1538
    %v1541 = vsel %vm64, %v1539, 0.0
    %1542 = vadd.xlane.f32.xlu0 %v1541
    %v1543 = vpop.xlane.xlu0 %1542
    %v1544 = vsel %vm64, %v1540, 0.0
    %1545 = vadd.xlane.f32.xlu0 %v1544
    %v1546 = vpop.xlane.xlu0 %1545
    %v1547 = vmul.f32 %v1543, %v695
    %v1548 = vmul.f32 %v1546, %v695
    %v1549 = vadd.f32 %v1547, 1e-05
    %v1550 = vadd.f32 %v1548, 1e-05
    %v1551 = vrsqrt.pop %v1549
    %v1552 = vmul.f32 %v1551, %v1549
    %v1553 = vmul.f32 %v1552, %v1551
    %v1554 = vmul.f32 0.5, %v1553
    %v1555 = vsub.f32 1.5, %v1554
    %v1556 = vmul.f32 %v1551, %v1555
    %vm1557 = vweird.f32 %v1549
    %vm1558 = vweird.f32 %v1551
    %vm1559 = vmor %vm1557, %vm1558
    %v1560 = vsel %vm1559, %v1551, %v1556
    %v1561 = vrsqrt.pop %v1550
    %v1562 = vmul.f32 %v1561, %v1550
    %v1563 = vmul.f32 %v1562, %v1561
    %v1564 = vmul.f32 0.5, %v1563
    %v1565 = vsub.f32 1.5, %v1564
    %v1566 = vmul.f32 %v1561, %v1565
    %vm1567 = vweird.f32 %v1550
    %vm1568 = vweird.f32 %v1561
    %vm1569 = vmor %vm1567, %vm1568
    %v1570 = vsel %vm1569, %v1561, %v1566
    %v1571 = vmul.f32 %v1537, %v1560
    %v1572 = vmul.f32 %v1538, %v1570
    %v1573 = vmul.f32 %v1571, %v734
    %v1574 = vmul.f32 %v1572, %v734
    %v1575 = vadd.f32 %v1573, %v737
    %v1576 = vadd.f32 %v1574, %v737
    %v1577 = vadd.f32 %v1524, %v1575
    %v1578 = vadd.f32 %v1527, %v1576
    %v1579 = vadd.f32 %v1524, %v1577
    %v1580 = vadd.f32 %v1527, %v1578
    %v1582 = vsel %vm64, %v1579, 0
    %v1585 = vsel %vm64, %v1580, 0
    %1587 = vmatpush.msra.mxu0 0.0
    %1588 = vmatpush.msra.mxu0 0.0
    %1589 = vmatpush.msra.mxu0 0.0
    %1590 = vmatpush.msra.mxu0 0.0
    %1591 = vmatpush.msra.mxu0 0.0
    %1592 = vmatpush.msra.mxu0 0.0
    %1593 = vmatpush.msra.mxu0 0.0
    %1594 = vmatpush.msra.mxu0 0.0
    %1595 = vmatpush.msra.mxu0 0.0
    %1596 = vmatpush.msra.mxu0 0.0
    %1597 = vmatpush.msra.mxu0 0.0
    %1598 = vmatpush.msra.mxu0 0.0
    %1599 = vmatpush.msra.mxu0 %v45
    %1600 = vmatpush.msra.mxu0 %v44
    %1601 = vmatpush.msra.mxu0 %v43
    %1602 = vmatpush.msra.mxu0 %v42
    %1603 = vmatmul.f32.gmra.mxu0 %v1582
    %v1604 = vpop.f32.mrf.mxu0
    %v1605 = vadd.f32 %v745, %v1604
    %1606 = vmatmul.f32.gmra.mxu0 %v1585
    %v1607 = vpop.f32.mrf.mxu0
    %v1608 = vadd.f32 %v745, %v1607
    %1609 = vdwg.mxu0
    %v1610 = vmax.f32 %v1605, 0.0
    %v1611 = vmax.f32 %v1608, 0.0
    %v1613 = vsel %vm779, %v1610, 0
    %v1616 = vsel %vm779, %v1611, 0
    %1618 = vmatpush.msra.mxu0 0.0
    %1619 = vmatpush.msra.mxu0 0.0
    %1620 = vmatpush.msra.mxu0 0.0
    %1621 = vmatpush.msra.mxu0 0.0
    %1622 = vmatpush.msra.mxu0 0.0
    %1623 = vmatpush.msra.mxu0 0.0
    %1624 = vmatpush.msra.mxu0 0.0
    %1625 = vmatpush.msra.mxu0 0.0
    %1626 = vmatpush.msra.mxu0 %v54
    %1627 = vmatpush.msra.mxu0 %v53
    %1628 = vmatpush.msra.mxu0 %v52
    %1629 = vmatpush.msra.mxu0 %v51
    %1630 = vmatpush.msra.mxu0 %v50
    %1631 = vmatpush.msra.mxu0 %v49
    %1632 = vmatpush.msra.mxu0 %v48
    %1633 = vmatpush.msra.mxu0 %v47
    %1634 = vmatmul.f32.gmra.mxu0 %v1613
    %v1635 = vpop.f32.mrf.mxu0
    %v1636 = vadd.f32 %v778, %v1635
    %1637 = vmatmul.f32.gmra.mxu0 %v1616
    %v1638 = vpop.f32.mrf.mxu0
    %v1639 = vadd.f32 %v778, %v1638
    %1640 = vdwg.mxu0
    %v1641 = vsel %vm64, %v1636, 0.0
    %1642 = vadd.xlane.f32.xlu0 %v1641
    %v1643 = vpop.xlane.xlu0 %1642
    %v1644 = vsel %vm64, %v1639, 0.0
    %1645 = vadd.xlane.f32.xlu0 %v1644
    %v1646 = vpop.xlane.xlu0 %1645
    %v1647 = vmul.f32 %v1643, %v695
    %v1648 = vmul.f32 %v1646, %v695
    %v1649 = vsub.f32 %v1636, %v1647
    %v1650 = vsub.f32 %v1639, %v1648
    %v1651 = vmul.f32 %v1649, %v1649
    %v1652 = vmul.f32 %v1650, %v1650
    %v1653 = vsel %vm64, %v1651, 0.0
    %1654 = vadd.xlane.f32.xlu0 %v1653
    %v1655 = vpop.xlane.xlu0 %1654
    %v1656 = vsel %vm64, %v1652, 0.0
    %1657 = vadd.xlane.f32.xlu0 %v1656
    %v1658 = vpop.xlane.xlu0 %1657
    %v1659 = vmul.f32 %v1655, %v695
    %v1660 = vmul.f32 %v1658, %v695
    %v1661 = vadd.f32 %v1659, 1e-05
    %v1662 = vadd.f32 %v1660, 1e-05
    %v1663 = vrsqrt.pop %v1661
    %v1664 = vmul.f32 %v1663, %v1661
    %v1665 = vmul.f32 %v1664, %v1663
    %v1666 = vmul.f32 0.5, %v1665
    %v1667 = vsub.f32 1.5, %v1666
    %v1668 = vmul.f32 %v1663, %v1667
    %vm1669 = vweird.f32 %v1661
    %vm1670 = vweird.f32 %v1663
    %vm1671 = vmor %vm1669, %vm1670
    %v1672 = vsel %vm1671, %v1663, %v1668
    %v1673 = vrsqrt.pop %v1662
    %v1674 = vmul.f32 %v1673, %v1662
    %v1675 = vmul.f32 %v1674, %v1673
    %v1676 = vmul.f32 0.5, %v1675
    %v1677 = vsub.f32 1.5, %v1676
    %v1678 = vmul.f32 %v1673, %v1677
    %vm1679 = vweird.f32 %v1662
    %vm1680 = vweird.f32 %v1673
    %vm1681 = vmor %vm1679, %vm1680
    %v1682 = vsel %vm1681, %v1673, %v1678
    %v1683 = vmul.f32 %v1649, %v1672
    %v1684 = vmul.f32 %v1650, %v1682
    %v1685 = vmul.f32 %v1683, %v734
    %v1686 = vmul.f32 %v1684, %v734
    %v1687 = vadd.f32 %v1685, %v737
    %v1688 = vadd.f32 %v1686, %v737
    %v1689 = vadd.f32 %v1636, %v1687
    %v1690 = vadd.f32 %v1639, %v1688
    %v1691 = vsel %vm64, %v1579, 0.0
    %1692 = vadd.xlane.f32.xlu0 %v1691
    %v1693 = vpop.xlane.xlu0 %1692
    %v1694 = vsel %vm64, %v1580, 0.0
    %1695 = vadd.xlane.f32.xlu0 %v1694
    %v1696 = vpop.xlane.xlu0 %1695
    %v1697 = vmul.f32 %v1693, %v695
    %v1698 = vmul.f32 %v1696, %v695
    %v1699 = vsub.f32 %v1579, %v1697
    %v1700 = vsub.f32 %v1580, %v1698
    %v1701 = vmul.f32 %v1699, %v1699
    %v1702 = vmul.f32 %v1700, %v1700
    %v1703 = vsel %vm64, %v1701, 0.0
    %1704 = vadd.xlane.f32.xlu0 %v1703
    %v1705 = vpop.xlane.xlu0 %1704
    %v1706 = vsel %vm64, %v1702, 0.0
    %1707 = vadd.xlane.f32.xlu0 %v1706
    %v1708 = vpop.xlane.xlu0 %1707
    %v1709 = vmul.f32 %v1705, %v695
    %v1710 = vmul.f32 %v1708, %v695
    %v1711 = vadd.f32 %v1709, 1e-05
    %v1712 = vadd.f32 %v1710, 1e-05
    %v1713 = vrsqrt.pop %v1711
    %v1714 = vmul.f32 %v1713, %v1711
    %v1715 = vmul.f32 %v1714, %v1713
    %v1716 = vmul.f32 0.5, %v1715
    %v1717 = vsub.f32 1.5, %v1716
    %v1718 = vmul.f32 %v1713, %v1717
    %vm1719 = vweird.f32 %v1711
    %vm1720 = vweird.f32 %v1713
    %vm1721 = vmor %vm1719, %vm1720
    %v1722 = vsel %vm1721, %v1713, %v1718
    %v1723 = vrsqrt.pop %v1712
    %v1724 = vmul.f32 %v1723, %v1712
    %v1725 = vmul.f32 %v1724, %v1723
    %v1726 = vmul.f32 0.5, %v1725
    %v1727 = vsub.f32 1.5, %v1726
    %v1728 = vmul.f32 %v1723, %v1727
    %vm1729 = vweird.f32 %v1712
    %vm1730 = vweird.f32 %v1723
    %vm1731 = vmor %vm1729, %vm1730
    %v1732 = vsel %vm1731, %v1723, %v1728
    %v1733 = vmul.f32 %v1699, %v1722
    %v1734 = vmul.f32 %v1700, %v1732
    %v1735 = vmul.f32 %v1733, %v903
    %v1736 = vmul.f32 %v1734, %v903
    %v1737 = vadd.f32 %v1735, %v906
    %v1738 = vadd.f32 %v1736, %v906
    %v1739 = vadd.f32 %v1579, %v1737
    %v1740 = vadd.f32 %v1580, %v1738
    %v1741 = vadd.f32 %v1739, %v1689
    %v1742 = vadd.f32 %v1740, %v1690
    %v1743 = vadd.f32 %v1689, %v1741
    %v1744 = vadd.f32 %v1690, %v1742
    %1745 = vst.msk [vmem:[#allocation2] sm:$0xff] %vm64, %v1743
    %1746 = vst.msk [vmem:[#allocation2 + $0x8] sm:$0xff] %vm64, %v1744
    // Predicated region
    $region38: #{transformer_encoder.1} parent=1 // pred_check
      _
    $region39: #{transformer_encoder.1} parent=1 // pred_check_branch
      %1748 = sbr.rel (0) target = $region41
    $region40: #{transformer_encoder.1} parent=1 // pred_region
      %1750 = vsyncadd [#allocation3], 0
      %s1751 = sshll.u32 [#allocation2], 4
      %s1752 = int_to_ptr.vmem [resolvable:$true] %s1751
      %s1753 = sshll.u32 %s9, 4
      %s1754 = int_to_ptr.hbm [resolvable:$true] %s1753
      %1759 = dma.vmem_to_hbm [thread:$0]  %s1752, 256, %s1754, [#allocation3], 128, 128, 8
    $region41: #{transformer_encoder.1} parent=1 // pred_fallthru
      _
    // Predicated region
    $region42: #{transformer_encoder.1} parent=1 // pred_check
      _
    $region43: #{transformer_encoder.1} parent=1 // pred_check_branch
      %1761 = sbr.rel (0) target = $region45
    $region44: #{transformer_encoder.1} parent=1 // pred_region
      %1763 = dma.done [#allocation3], 256
    $region45: #{transformer_encoder.1} parent=1 // pred_fallthru
      _
    %1764 = vsyncpa [#allocation3], 1

</llo_original>
